<compile_context>
chip_gen: v5e
topology: v5e:2x2
jax: 0.10.0
libtpu: 0.0.40
codegen_flags: <defaults>
</compile_context>

<pallas_src>
import functools

import jax
import jax.numpy as jnp
from jax.experimental import pallas as pl
from jax.experimental.pallas import tpu as pltpu  # noqa: F401  (no TPU-specific params needed)

HIGHEST = jax.lax.Precision.HIGHEST


def _round_up(n, m):
    return ((n + m - 1) // m) * m


def _sigmoid(x):
    # Written explicitly (exp + div) so lowering is unambiguous on all TPU gens.
    return 1.0 / (1.0 + jnp.exp(-x))


# ---------------------------------------------------------------------------
# Fused kernel: LSTM recurrence (serial part) + MLP head, single invocation.
# ---------------------------------------------------------------------------
def _lstm_mlp_kernel(gx_ref, whh_ref, feat_ref, w1h_ref, w1f_ref, b1_ref,
                     w2_ref, b2_ref, w3_ref, b3_ref, out_ref, *, hp, seq_len):
    f32 = jnp.float32
    # Upcast bf16 weights once, hoisted out of the recurrence.
    whh = whh_ref[...].astype(f32)                                  # [HP, 4*HP]

    def step(t, carry):
        h, c = carry
        # gates_x[t] (precomputed, bias folded in) + h @ W_hh
        gates = gx_ref[t] + jnp.dot(h, whh, preferred_element_type=f32)   # [1, 4*HP]
        i_g = _sigmoid(gates[:, 0 * hp:1 * hp])
        f_g = _sigmoid(gates[:, 1 * hp:2 * hp])
        g_g = jnp.tanh(gates[:, 2 * hp:3 * hp])
        o_g = _sigmoid(gates[:, 3 * hp:4 * hp])
        c = f_g * c + i_g * g_g
        h = o_g * jnp.tanh(c)
        return h, c

    h0 = jnp.zeros((1, hp), f32)
    c0 = jnp.zeros((1, hp), f32)
    h, _ = jax.lax.fori_loop(0, seq_len, step, (h0, c0), unroll=True)

    # MLP head (straight-line epilogue): concat([h, feat]) @ W1 == h@W1_h + feat@W1_f
    z1 = (jnp.dot(h, w1h_ref[...].astype(f32), preferred_element_type=f32)
          + jnp.dot(feat_ref[...], w1f_ref[...].astype(f32), preferred_element_type=f32)
          + b1_ref[...])
    z1 = jnp.maximum(z1, 0.0)
    z2 = jnp.maximum(
        jnp.dot(z1, w2_ref[...].astype(f32), preferred_element_type=f32) + b2_ref[...],
        0.0)
    out_ref[...] = (jnp.dot(z2, w3_ref[...].astype(f32), preferred_element_type=f32)
                    + b3_ref[...]).astype(out_ref.dtype)


# ---------------------------------------------------------------------------
# Wrapper: batched input projection (XLA) + fused Pallas kernel.
# ---------------------------------------------------------------------------
def mlp_projector_forward(packed, cfg, word_vecs, features):
    """word_vecs: [T, in_dim_1] f32; features: [in_dim_2] f32 -> [1, 1, out_dim]."""
    T = word_vecs.shape[0]
    H, HP, FP, OUTP = cfg["hidden"], cfg["hp"], cfg["fp"], cfg["outp"]

    # Non-recurrent input projection, batched over all T timesteps (plain XLA op).
    gx = (jnp.dot(word_vecs, packed["w_ih"].astype(jnp.float32), precision=HIGHEST)
          + packed["b_lstm"])                                        # [T, 4*H]
    # Scatter each 64-wide gate into its own 128-lane slot (padding is inert zeros).
    gx = jnp.pad(gx.reshape(T, 4, H), ((0, 0), (0, 0), (0, HP - H)))
    gx = gx.reshape(T, 1, 4 * HP)

    feat = jnp.zeros((1, FP), jnp.float32).at[0, :cfg["in_dim_2"]].set(features)

    out = pl.pallas_call(
        functools.partial(_lstm_mlp_kernel, hp=HP, seq_len=T),
        out_shape=jax.ShapeDtypeStruct((1, OUTP), jnp.float32),
        # No grid / BlockSpecs: every operand is a small whole array resident in
        # VMEM for the single invocation (total < 0.5 MiB).
    )(gx, packed["w_hh"], feat, packed["w1_h"], packed["w1_f"], packed["b1"],
      packed["w2"], packed["b2"], packed["w3"], packed["b3"])

    return out[:, :cfg["out_dim"]].reshape(1, 1, cfg["out_dim"])


# ---------------------------------------------------------------------------
# Parameters: raw (unpadded, PyTorch-equivalent [in, out] layout) + packed
# (padded kernel layout, matrices stored bf16, pads are zero => inert).
# ---------------------------------------------------------------------------
def init_params(key, cfg):
    H, D1, D2, DO = cfg["hidden"], cfg["in_dim_1"], cfg["in_dim_2"], cfg["out_dim"]
    keys = iter(jax.random.split(key, 12))

    def u(shape, scale):
        return jax.random.uniform(next(keys), shape, jnp.float32, -scale, scale)

    s_l = 1.0 / (H ** 0.5)
    s1 = 1.0 / ((H + D2) ** 0.5)
    s2 = 1.0 / (H ** 0.5)
    raw = {
        # LSTM weights stored [in, out], PyTorch gate order i|f|g|o.
        "w_ih": u((D1, 4 * H), s_l).astype(jnp.bfloat16),
        "w_hh": u((H, 4 * H), s_l).astype(jnp.bfloat16),
        "b_lstm": u((4 * H,), s_l) + u((4 * H,), s_l),      # b_ih + b_hh
        "w1": u((H + D2, H), s1).astype(jnp.bfloat16),      # rows: [hn | features]
        "b1": u((H,), s1),
        "w2": u((H, H), s2).astype(jnp.bfloat16),
        "b2": u((H,), s2),
        "w3": u((H, DO), s2).astype(jnp.bfloat16),
        "b3": u((DO,), s2),
    }
    return raw


def pack_params(raw, cfg):
    H, HP, FP, OUTP = cfg["hidden"], cfg["hp"], cfg["fp"], cfg["outp"]
    D2, DO = cfg["in_dim_2"], cfg["out_dim"]
    bf16, f32 = jnp.bfloat16, jnp.float32

    # W_hh: [H, 4*H] -> [HP, 4*HP], each 64-wide gate in its own 128-lane slot.
    w_hh = jnp.zeros((HP, 4 * HP), bf16)
    for g in range(4):
        w_hh = w_hh.at[:H, g * HP:g * HP + H].set(raw["w_hh"][:, g * H:(g + 1) * H])

    return {
        "w_ih": raw["w_ih"],          # used only in the outside precompute (unpadded)
        "b_lstm": raw["b_lstm"],
        "w_hh": w_hh,
        "w1_h": jnp.zeros((HP, HP), bf16).at[:H, :H].set(raw["w1"][:H, :]),
        "w1_f": jnp.zeros((FP, HP), bf16).at[:D2, :H].set(raw["w1"][H:, :]),
        "b1": jnp.zeros((1, HP), f32).at[0, :H].set(raw["b1"]),
        "w2": jnp.zeros((HP, HP), bf16).at[:H, :H].set(raw["w2"]),
        "b2": jnp.zeros((1, HP), f32).at[0, :H].set(raw["b2"]),
        "w3": jnp.zeros((HP, OUTP), bf16).at[:H, :DO].set(raw["w3"]),
        "b3": jnp.zeros((1, OUTP), f32).at[0, :DO].set(raw["b3"]),
    }


# ---------------------------------------------------------------------------
# Pure-JAX reference on the RAW (unpadded) params -> validates padding layout,
# the batched gate precompute, and the fused kernel math.
# ---------------------------------------------------------------------------
def reference_forward(raw, cfg, word_vecs, features):
    f32 = jnp.float32
    H = cfg["hidden"]
    dot = functools.partial(jnp.dot, precision=HIGHEST)
    w_ih = raw["w_ih"].astype(f32)
    w_hh = raw["w_hh"].astype(f32)
    b = raw["b_lstm"]
    h = jnp.zeros((1, H), f32)
    c = jnp.zeros((1, H), f32)
    for t in range(word_vecs.shape[0]):
        g = dot(word_vecs[t:t + 1], w_ih) + dot(h, w_hh) + b
        i = _sigmoid(g[:, 0 * H:1 * H])
        f = _sigmoid(g[:, 1 * H:2 * H])
        gg = jnp.tanh(g[:, 2 * H:3 * H])
        o = _sigmoid(g[:, 3 * H:4 * H])
        c = f * c + i * gg
        h = o * jnp.tanh(c)
    x = jnp.concatenate([h, features[None, :]], axis=-1)        # [1, H + in_dim_2]
    z1 = jax.nn.relu(dot(x, raw["w1"].astype(f32)) + raw["b1"])
    z2 = jax.nn.relu(dot(z1, raw["w2"].astype(f32)) + raw["b2"])
    out = dot(z2, raw["w3"].astype(f32)) + raw["b3"]
    return out.reshape(1, 1, cfg["out_dim"])


if __name__ == "__main__":
    cfg = dict(hidden=64, in_dim_1=300, in_dim_2=50, out_dim=300)
    cfg["hp"] = _round_up(cfg["hidden"], 128)     # 128
    cfg["fp"] = _round_up(cfg["in_dim_2"], 128)   # 128
    cfg["outp"] = _round_up(cfg["out_dim"], 128)  # 384

    key = jax.random.PRNGKey(0)
    k_param, k_words, k_feat = jax.random.split(key, 3)

    T = 8  # vector[:-1] -> word vectors; vector[-1] -> cumulative features
    raw = init_params(k_param, cfg)
    packed = pack_params(raw, cfg)
    # TODO(synk): the PyTorch forward builds its tensors from a Python list-of-lists
    # on the host; here the equivalent arrays are constructed directly.
    word_vecs = jax.random.normal(k_words, (T, cfg["in_dim_1"]), jnp.float32)
    features = jax.random.normal(k_feat, (cfg["in_dim_2"],), jnp.float32)

    fwd = jax.jit(functools.partial(mlp_projector_forward, packed, cfg))
    out = jax.block_until_ready(fwd(word_vecs, features))

    assert out.shape == (1, 1, cfg["out_dim"]), out.shape
    assert bool(jnp.all(jnp.isfinite(out)))

    ref = reference_forward(raw, cfg, word_vecs, features)
    max_err = float(jnp.max(jnp.abs(out - ref)))
    # Tightened from 2e-2; weights are bf16-stored but all math is f32, so 1e-3
    # comfortably catches any layout/fusion bug while tolerating MXU pass-count
    # differences between Mosaic and the XLA reference.
    assert bool(jnp.allclose(out, ref, atol=1e-3, rtol=1e-3)), max_err

    print("KERNEL_OK")
</pallas_src>

<mosaic_0001>
module attributes {stable_mosaic.version = 11 : i64} {
  func.func @_lstm_mlp_kernel(%arg0: memref<8x1x512xf32, #tpu.memory_space<vmem>>, %arg1: memref<128x512xbf16, #tpu.memory_space<vmem>>, %arg2: memref<1x128xf32, #tpu.memory_space<vmem>>, %arg3: memref<128x128xbf16, #tpu.memory_space<vmem>>, %arg4: memref<128x128xbf16, #tpu.memory_space<vmem>>, %arg5: memref<1x128xf32, #tpu.memory_space<vmem>>, %arg6: memref<128x128xbf16, #tpu.memory_space<vmem>>, %arg7: memref<1x128xf32, #tpu.memory_space<vmem>>, %arg8: memref<128x384xbf16, #tpu.memory_space<vmem>>, %arg9: memref<1x384xf32, #tpu.memory_space<vmem>>, %arg10: memref<1x384xf32, #tpu.memory_space<vmem>>) attributes {dimension_semantics = [], scalar_prefetch = 0 : i64, scratch_operands = 0 : i64, tpu.core_type = #tpu.core_type<tc>} {
    %c0 = arith.constant 0 : index
    %c0_0 = arith.constant 0 : index
    %0 = vector.load %arg1[%c0, %c0_0] : memref<128x512xbf16, #tpu.memory_space<vmem>>, vector<128x512xbf16>
    %1 = arith.extf %0 : vector<128x512xbf16> to vector<128x512xf32>
    %cst = arith.constant 0.000000e+00 : f32
    %2 = vector.broadcast %cst : f32 to vector<1x128xf32>
    %cst_1 = arith.constant 0.000000e+00 : f32
    %3 = vector.broadcast %cst_1 : f32 to vector<1x128xf32>
    %c0_i32 = arith.constant 0 : i32
    %4 = arith.index_cast %c0_i32 : i32 to index
    %c0_2 = arith.constant 0 : index
    %c0_3 = arith.constant 0 : index
    %5 = vector.load %arg0[%4, %c0_2, %c0_3] : memref<8x1x512xf32, #tpu.memory_space<vmem>>, vector<1x1x512xf32>
    %6 = vector.shape_cast %5 : vector<1x1x512xf32> to vector<1x512xf32>
    %cst_4 = arith.constant dense<0.000000e+00> : vector<1x512xf32>
    %7 = tpu.matmul %2, %1, %cst_4 {dimension_numbers = #tpu.dot_dimension_numbers<[1], [0], [0], [1], [0, 0, 1, 1], [], []>} : vector<1x128xf32>, vector<128x512xf32>, vector<1x512xf32> -> vector<1x512xf32>
    %8 = arith.addf %6, %7 : vector<1x512xf32>
    %9 = vector.extract_strided_slice %8 {offsets = [0, 0], sizes = [1, 128], strides = [1, 1]} : vector<1x512xf32> to vector<1x128xf32>
    %cst_5 = arith.constant 0.000000e+00 : f32
    %10 = vector.broadcast %cst_5 : f32 to vector<1x128xf32>
    %11 = arith.subf %10, %9 : vector<1x128xf32>
    %12 = math.exp %11 : vector<1x128xf32>
    %cst_6 = arith.constant 1.000000e+00 : f32
    %13 = vector.broadcast %cst_6 : f32 to vector<1x128xf32>
    %14 = arith.addf %13, %12 : vector<1x128xf32>
    %cst_7 = arith.constant 1.000000e+00 : f32
    %15 = vector.broadcast %cst_7 : f32 to vector<1x128xf32>
    %16 = arith.divf %15, %14 : vector<1x128xf32>
    %17 = vector.extract_strided_slice %8 {offsets = [0, 128], sizes = [1, 128], strides = [1, 1]} : vector<1x512xf32> to vector<1x128xf32>
    %cst_8 = arith.constant 0.000000e+00 : f32
    %18 = vector.broadcast %cst_8 : f32 to vector<1x128xf32>
    %19 = arith.subf %18, %17 : vector<1x128xf32>
    %20 = math.exp %19 : vector<1x128xf32>
    %cst_9 = arith.constant 1.000000e+00 : f32
    %21 = vector.broadcast %cst_9 : f32 to vector<1x128xf32>
    %22 = arith.addf %21, %20 : vector<1x128xf32>
    %cst_10 = arith.constant 1.000000e+00 : f32
    %23 = vector.broadcast %cst_10 : f32 to vector<1x128xf32>
    %24 = arith.divf %23, %22 : vector<1x128xf32>
    %25 = vector.extract_strided_slice %8 {offsets = [0, 256], sizes = [1, 128], strides = [1, 1]} : vector<1x512xf32> to vector<1x128xf32>
    %26 = math.tanh %25 : vector<1x128xf32>
    %27 = vector.extract_strided_slice %8 {offsets = [0, 384], sizes = [1, 128], strides = [1, 1]} : vector<1x512xf32> to vector<1x128xf32>
    %cst_11 = arith.constant 0.000000e+00 : f32
    %28 = vector.broadcast %cst_11 : f32 to vector<1x128xf32>
    %29 = arith.subf %28, %27 : vector<1x128xf32>
    %30 = math.exp %29 : vector<1x128xf32>
    %cst_12 = arith.constant 1.000000e+00 : f32
    %31 = vector.broadcast %cst_12 : f32 to vector<1x128xf32>
    %32 = arith.addf %31, %30 : vector<1x128xf32>
    %cst_13 = arith.constant 1.000000e+00 : f32
    %33 = vector.broadcast %cst_13 : f32 to vector<1x128xf32>
    %34 = arith.divf %33, %32 : vector<1x128xf32>
    %35 = arith.mulf %24, %3 : vector<1x128xf32>
    %36 = arith.mulf %16, %26 : vector<1x128xf32>
    %37 = arith.addf %35, %36 : vector<1x128xf32>
    %38 = math.tanh %37 : vector<1x128xf32>
    %39 = arith.mulf %34, %38 : vector<1x128xf32>
    %c1_i32 = arith.constant 1 : i32
    %40 = arith.index_cast %c1_i32 : i32 to index
    %c0_14 = arith.constant 0 : index
    %c0_15 = arith.constant 0 : index
    %41 = vector.load %arg0[%40, %c0_14, %c0_15] : memref<8x1x512xf32, #tpu.memory_space<vmem>>, vector<1x1x512xf32>
    %42 = vector.shape_cast %41 : vector<1x1x512xf32> to vector<1x512xf32>
    %cst_16 = arith.constant dense<0.000000e+00> : vector<1x512xf32>
    %43 = tpu.matmul %39, %1, %cst_16 {dimension_numbers = #tpu.dot_dimension_numbers<[1], [0], [0], [1], [0, 0, 1, 1], [], []>} : vector<1x128xf32>, vector<128x512xf32>, vector<1x512xf32> -> vector<1x512xf32>
    %44 = arith.addf %42, %43 : vector<1x512xf32>
    %45 = vector.extract_strided_slice %44 {offsets = [0, 0], sizes = [1, 128], strides = [1, 1]} : vector<1x512xf32> to vector<1x128xf32>
    %cst_17 = arith.constant 0.000000e+00 : f32
    %46 = vector.broadcast %cst_17 : f32 to vector<1x128xf32>
    %47 = arith.subf %46, %45 : vector<1x128xf32>
    %48 = math.exp %47 : vector<1x128xf32>
    %cst_18 = arith.constant 1.000000e+00 : f32
    %49 = vector.broadcast %cst_18 : f32 to vector<1x128xf32>
    %50 = arith.addf %49, %48 : vector<1x128xf32>
    %cst_19 = arith.constant 1.000000e+00 : f32
    %51 = vector.broadcast %cst_19 : f32 to vector<1x128xf32>
    %52 = arith.divf %51, %50 : vector<1x128xf32>
    %53 = vector.extract_strided_slice %44 {offsets = [0, 128], sizes = [1, 128], strides = [1, 1]} : vector<1x512xf32> to vector<1x128xf32>
    %cst_20 = arith.constant 0.000000e+00 : f32
    %54 = vector.broadcast %cst_20 : f32 to vector<1x128xf32>
    %55 = arith.subf %54, %53 : vector<1x128xf32>
    %56 = math.exp %55 : vector<1x128xf32>
    %cst_21 = arith.constant 1.000000e+00 : f32
    %57 = vector.broadcast %cst_21 : f32 to vector<1x128xf32>
    %58 = arith.addf %57, %56 : vector<1x128xf32>
    %cst_22 = arith.constant 1.000000e+00 : f32
    %59 = vector.broadcast %cst_22 : f32 to vector<1x128xf32>
    %60 = arith.divf %59, %58 : vector<1x128xf32>
    %61 = vector.extract_strided_slice %44 {offsets = [0, 256], sizes = [1, 128], strides = [1, 1]} : vector<1x512xf32> to vector<1x128xf32>
    %62 = math.tanh %61 : vector<1x128xf32>
    %63 = vector.extract_strided_slice %44 {offsets = [0, 384], sizes = [1, 128], strides = [1, 1]} : vector<1x512xf32> to vector<1x128xf32>
    %cst_23 = arith.constant 0.000000e+00 : f32
    %64 = vector.broadcast %cst_23 : f32 to vector<1x128xf32>
    %65 = arith.subf %64, %63 : vector<1x128xf32>
    %66 = math.exp %65 : vector<1x128xf32>
    %cst_24 = arith.constant 1.000000e+00 : f32
    %67 = vector.broadcast %cst_24 : f32 to vector<1x128xf32>
    %68 = arith.addf %67, %66 : vector<1x128xf32>
    %cst_25 = arith.constant 1.000000e+00 : f32
    %69 = vector.broadcast %cst_25 : f32 to vector<1x128xf32>
    %70 = arith.divf %69, %68 : vector<1x128xf32>
    %71 = arith.mulf %60, %37 : vector<1x128xf32>
    %72 = arith.mulf %52, %62 : vector<1x128xf32>
    %73 = arith.addf %71, %72 : vector<1x128xf32>
    %74 = math.tanh %73 : vector<1x128xf32>
    %75 = arith.mulf %70, %74 : vector<1x128xf32>
    %c2_i32 = arith.constant 2 : i32
    %76 = arith.index_cast %c2_i32 : i32 to index
    %c0_26 = arith.constant 0 : index
    %c0_27 = arith.constant 0 : index
    %77 = vector.load %arg0[%76, %c0_26, %c0_27] : memref<8x1x512xf32, #tpu.memory_space<vmem>>, vector<1x1x512xf32>
    %78 = vector.shape_cast %77 : vector<1x1x512xf32> to vector<1x512xf32>
    %cst_28 = arith.constant dense<0.000000e+00> : vector<1x512xf32>
    %79 = tpu.matmul %75, %1, %cst_28 {dimension_numbers = #tpu.dot_dimension_numbers<[1], [0], [0], [1], [0, 0, 1, 1], [], []>} : vector<1x128xf32>, vector<128x512xf32>, vector<1x512xf32> -> vector<1x512xf32>
    %80 = arith.addf %78, %79 : vector<1x512xf32>
    %81 = vector.extract_strided_slice %80 {offsets = [0, 0], sizes = [1, 128], strides = [1, 1]} : vector<1x512xf32> to vector<1x128xf32>
    %cst_29 = arith.constant 0.000000e+00 : f32
    %82 = vector.broadcast %cst_29 : f32 to vector<1x128xf32>
    %83 = arith.subf %82, %81 : vector<1x128xf32>
    %84 = math.exp %83 : vector<1x128xf32>
    %cst_30 = arith.constant 1.000000e+00 : f32
    %85 = vector.broadcast %cst_30 : f32 to vector<1x128xf32>
    %86 = arith.addf %85, %84 : vector<1x128xf32>
    %cst_31 = arith.constant 1.000000e+00 : f32
    %87 = vector.broadcast %cst_31 : f32 to vector<1x128xf32>
    %88 = arith.divf %87, %86 : vector<1x128xf32>
    %89 = vector.extract_strided_slice %80 {offsets = [0, 128], sizes = [1, 128], strides = [1, 1]} : vector<1x512xf32> to vector<1x128xf32>
    %cst_32 = arith.constant 0.000000e+00 : f32
    %90 = vector.broadcast %cst_32 : f32 to vector<1x128xf32>
    %91 = arith.subf %90, %89 : vector<1x128xf32>
    %92 = math.exp %91 : vector<1x128xf32>
    %cst_33 = arith.constant 1.000000e+00 : f32
    %93 = vector.broadcast %cst_33 : f32 to vector<1x128xf32>
    %94 = arith.addf %93, %92 : vector<1x128xf32>
    %cst_34 = arith.constant 1.000000e+00 : f32
    %95 = vector.broadcast %cst_34 : f32 to vector<1x128xf32>
    %96 = arith.divf %95, %94 : vector<1x128xf32>
    %97 = vector.extract_strided_slice %80 {offsets = [0, 256], sizes = [1, 128], strides = [1, 1]} : vector<1x512xf32> to vector<1x128xf32>
    %98 = math.tanh %97 : vector<1x128xf32>
    %99 = vector.extract_strided_slice %80 {offsets = [0, 384], sizes = [1, 128], strides = [1, 1]} : vector<1x512xf32> to vector<1x128xf32>
    %cst_35 = arith.constant 0.000000e+00 : f32
    %100 = vector.broadcast %cst_35 : f32 to vector<1x128xf32>
    %101 = arith.subf %100, %99 : vector<1x128xf32>
    %102 = math.exp %101 : vector<1x128xf32>
    %cst_36 = arith.constant 1.000000e+00 : f32
    %103 = vector.broadcast %cst_36 : f32 to vector<1x128xf32>
    %104 = arith.addf %103, %102 : vector<1x128xf32>
    %cst_37 = arith.constant 1.000000e+00 : f32
    %105 = vector.broadcast %cst_37 : f32 to vector<1x128xf32>
    %106 = arith.divf %105, %104 : vector<1x128xf32>
    %107 = arith.mulf %96, %73 : vector<1x128xf32>
    %108 = arith.mulf %88, %98 : vector<1x128xf32>
    %109 = arith.addf %107, %108 : vector<1x128xf32>
    %110 = math.tanh %109 : vector<1x128xf32>
    %111 = arith.mulf %106, %110 : vector<1x128xf32>
    %c3_i32 = arith.constant 3 : i32
    %112 = arith.index_cast %c3_i32 : i32 to index
    %c0_38 = arith.constant 0 : index
    %c0_39 = arith.constant 0 : index
    %113 = vector.load %arg0[%112, %c0_38, %c0_39] : memref<8x1x512xf32, #tpu.memory_space<vmem>>, vector<1x1x512xf32>
    %114 = vector.shape_cast %113 : vector<1x1x512xf32> to vector<1x512xf32>
    %cst_40 = arith.constant dense<0.000000e+00> : vector<1x512xf32>
    %115 = tpu.matmul %111, %1, %cst_40 {dimension_numbers = #tpu.dot_dimension_numbers<[1], [0], [0], [1], [0, 0, 1, 1], [], []>} : vector<1x128xf32>, vector<128x512xf32>, vector<1x512xf32> -> vector<1x512xf32>
    %116 = arith.addf %114, %115 : vector<1x512xf32>
    %117 = vector.extract_strided_slice %116 {offsets = [0, 0], sizes = [1, 128], strides = [1, 1]} : vector<1x512xf32> to vector<1x128xf32>
    %cst_41 = arith.constant 0.000000e+00 : f32
    %118 = vector.broadcast %cst_41 : f32 to vector<1x128xf32>
    %119 = arith.subf %118, %117 : vector<1x128xf32>
    %120 = math.exp %119 : vector<1x128xf32>
    %cst_42 = arith.constant 1.000000e+00 : f32
    %121 = vector.broadcast %cst_42 : f32 to vector<1x128xf32>
    %122 = arith.addf %121, %120 : vector<1x128xf32>
    %cst_43 = arith.constant 1.000000e+00 : f32
    %123 = vector.broadcast %cst_43 : f32 to vector<1x128xf32>
    %124 = arith.divf %123, %122 : vector<1x128xf32>
    %125 = vector.extract_strided_slice %116 {offsets = [0, 128], sizes = [1, 128], strides = [1, 1]} : vector<1x512xf32> to vector<1x128xf32>
    %cst_44 = arith.constant 0.000000e+00 : f32
    %126 = vector.broadcast %cst_44 : f32 to vector<1x128xf32>
    %127 = arith.subf %126, %125 : vector<1x128xf32>
    %128 = math.exp %127 : vector<1x128xf32>
    %cst_45 = arith.constant 1.000000e+00 : f32
    %129 = vector.broadcast %cst_45 : f32 to vector<1x128xf32>
    %130 = arith.addf %129, %128 : vector<1x128xf32>
    %cst_46 = arith.constant 1.000000e+00 : f32
    %131 = vector.broadcast %cst_46 : f32 to vector<1x128xf32>
    %132 = arith.divf %131, %130 : vector<1x128xf32>
    %133 = vector.extract_strided_slice %116 {offsets = [0, 256], sizes = [1, 128], strides = [1, 1]} : vector<1x512xf32> to vector<1x128xf32>
    %134 = math.tanh %133 : vector<1x128xf32>
    %135 = vector.extract_strided_slice %116 {offsets = [0, 384], sizes = [1, 128], strides = [1, 1]} : vector<1x512xf32> to vector<1x128xf32>
    %cst_47 = arith.constant 0.000000e+00 : f32
    %136 = vector.broadcast %cst_47 : f32 to vector<1x128xf32>
    %137 = arith.subf %136, %135 : vector<1x128xf32>
    %138 = math.exp %137 : vector<1x128xf32>
    %cst_48 = arith.constant 1.000000e+00 : f32
    %139 = vector.broadcast %cst_48 : f32 to vector<1x128xf32>
    %140 = arith.addf %139, %138 : vector<1x128xf32>
    %cst_49 = arith.constant 1.000000e+00 : f32
    %141 = vector.broadcast %cst_49 : f32 to vector<1x128xf32>
    %142 = arith.divf %141, %140 : vector<1x128xf32>
    %143 = arith.mulf %132, %109 : vector<1x128xf32>
    %144 = arith.mulf %124, %134 : vector<1x128xf32>
    %145 = arith.addf %143, %144 : vector<1x128xf32>
    %146 = math.tanh %145 : vector<1x128xf32>
    %147 = arith.mulf %142, %146 : vector<1x128xf32>
    %c4_i32 = arith.constant 4 : i32
    %148 = arith.index_cast %c4_i32 : i32 to index
    %c0_50 = arith.constant 0 : index
    %c0_51 = arith.constant 0 : index
    %149 = vector.load %arg0[%148, %c0_50, %c0_51] : memref<8x1x512xf32, #tpu.memory_space<vmem>>, vector<1x1x512xf32>
    %150 = vector.shape_cast %149 : vector<1x1x512xf32> to vector<1x512xf32>
    %cst_52 = arith.constant dense<0.000000e+00> : vector<1x512xf32>
    %151 = tpu.matmul %147, %1, %cst_52 {dimension_numbers = #tpu.dot_dimension_numbers<[1], [0], [0], [1], [0, 0, 1, 1], [], []>} : vector<1x128xf32>, vector<128x512xf32>, vector<1x512xf32> -> vector<1x512xf32>
    %152 = arith.addf %150, %151 : vector<1x512xf32>
    %153 = vector.extract_strided_slice %152 {offsets = [0, 0], sizes = [1, 128], strides = [1, 1]} : vector<1x512xf32> to vector<1x128xf32>
    %cst_53 = arith.constant 0.000000e+00 : f32
    %154 = vector.broadcast %cst_53 : f32 to vector<1x128xf32>
    %155 = arith.subf %154, %153 : vector<1x128xf32>
    %156 = math.exp %155 : vector<1x128xf32>
    %cst_54 = arith.constant 1.000000e+00 : f32
    %157 = vector.broadcast %cst_54 : f32 to vector<1x128xf32>
    %158 = arith.addf %157, %156 : vector<1x128xf32>
    %cst_55 = arith.constant 1.000000e+00 : f32
    %159 = vector.broadcast %cst_55 : f32 to vector<1x128xf32>
    %160 = arith.divf %159, %158 : vector<1x128xf32>
    %161 = vector.extract_strided_slice %152 {offsets = [0, 128], sizes = [1, 128], strides = [1, 1]} : vector<1x512xf32> to vector<1x128xf32>
    %cst_56 = arith.constant 0.000000e+00 : f32
    %162 = vector.broadcast %cst_56 : f32 to vector<1x128xf32>
    %163 = arith.subf %162, %161 : vector<1x128xf32>
    %164 = math.exp %163 : vector<1x128xf32>
    %cst_57 = arith.constant 1.000000e+00 : f32
    %165 = vector.broadcast %cst_57 : f32 to vector<1x128xf32>
    %166 = arith.addf %165, %164 : vector<1x128xf32>
    %cst_58 = arith.constant 1.000000e+00 : f32
    %167 = vector.broadcast %cst_58 : f32 to vector<1x128xf32>
    %168 = arith.divf %167, %166 : vector<1x128xf32>
    %169 = vector.extract_strided_slice %152 {offsets = [0, 256], sizes = [1, 128], strides = [1, 1]} : vector<1x512xf32> to vector<1x128xf32>
    %170 = math.tanh %169 : vector<1x128xf32>
    %171 = vector.extract_strided_slice %152 {offsets = [0, 384], sizes = [1, 128], strides = [1, 1]} : vector<1x512xf32> to vector<1x128xf32>
    %cst_59 = arith.constant 0.000000e+00 : f32
    %172 = vector.broadcast %cst_59 : f32 to vector<1x128xf32>
    %173 = arith.subf %172, %171 : vector<1x128xf32>
    %174 = math.exp %173 : vector<1x128xf32>
    %cst_60 = arith.constant 1.000000e+00 : f32
    %175 = vector.broadcast %cst_60 : f32 to vector<1x128xf32>
    %176 = arith.addf %175, %174 : vector<1x128xf32>
    %cst_61 = arith.constant 1.000000e+00 : f32
    %177 = vector.broadcast %cst_61 : f32 to vector<1x128xf32>
    %178 = arith.divf %177, %176 : vector<1x128xf32>
    %179 = arith.mulf %168, %145 : vector<1x128xf32>
    %180 = arith.mulf %160, %170 : vector<1x128xf32>
    %181 = arith.addf %179, %180 : vector<1x128xf32>
    %182 = math.tanh %181 : vector<1x128xf32>
    %183 = arith.mulf %178, %182 : vector<1x128xf32>
    %c5_i32 = arith.constant 5 : i32
    %184 = arith.index_cast %c5_i32 : i32 to index
    %c0_62 = arith.constant 0 : index
    %c0_63 = arith.constant 0 : index
    %185 = vector.load %arg0[%184, %c0_62, %c0_63] : memref<8x1x512xf32, #tpu.memory_space<vmem>>, vector<1x1x512xf32>
    %186 = vector.shape_cast %185 : vector<1x1x512xf32> to vector<1x512xf32>
    %cst_64 = arith.constant dense<0.000000e+00> : vector<1x512xf32>
    %187 = tpu.matmul %183, %1, %cst_64 {dimension_numbers = #tpu.dot_dimension_numbers<[1], [0], [0], [1], [0, 0, 1, 1], [], []>} : vector<1x128xf32>, vector<128x512xf32>, vector<1x512xf32> -> vector<1x512xf32>
    %188 = arith.addf %186, %187 : vector<1x512xf32>
    %189 = vector.extract_strided_slice %188 {offsets = [0, 0], sizes = [1, 128], strides = [1, 1]} : vector<1x512xf32> to vector<1x128xf32>
    %cst_65 = arith.constant 0.000000e+00 : f32
    %190 = vector.broadcast %cst_65 : f32 to vector<1x128xf32>
    %191 = arith.subf %190, %189 : vector<1x128xf32>
    %192 = math.exp %191 : vector<1x128xf32>
    %cst_66 = arith.constant 1.000000e+00 : f32
    %193 = vector.broadcast %cst_66 : f32 to vector<1x128xf32>
    %194 = arith.addf %193, %192 : vector<1x128xf32>
    %cst_67 = arith.constant 1.000000e+00 : f32
    %195 = vector.broadcast %cst_67 : f32 to vector<1x128xf32>
    %196 = arith.divf %195, %194 : vector<1x128xf32>
    %197 = vector.extract_strided_slice %188 {offsets = [0, 128], sizes = [1, 128], strides = [1, 1]} : vector<1x512xf32> to vector<1x128xf32>
    %cst_68 = arith.constant 0.000000e+00 : f32
    %198 = vector.broadcast %cst_68 : f32 to vector<1x128xf32>
    %199 = arith.subf %198, %197 : vector<1x128xf32>
    %200 = math.exp %199 : vector<1x128xf32>
    %cst_69 = arith.constant 1.000000e+00 : f32
    %201 = vector.broadcast %cst_69 : f32 to vector<1x128xf32>
    %202 = arith.addf %201, %200 : vector<1x128xf32>
    %cst_70 = arith.constant 1.000000e+00 : f32
    %203 = vector.broadcast %cst_70 : f32 to vector<1x128xf32>
    %204 = arith.divf %203, %202 : vector<1x128xf32>
    %205 = vector.extract_strided_slice %188 {offsets = [0, 256], sizes = [1, 128], strides = [1, 1]} : vector<1x512xf32> to vector<1x128xf32>
    %206 = math.tanh %205 : vector<1x128xf32>
    %207 = vector.extract_strided_slice %188 {offsets = [0, 384], sizes = [1, 128], strides = [1, 1]} : vector<1x512xf32> to vector<1x128xf32>
    %cst_71 = arith.constant 0.000000e+00 : f32
    %208 = vector.broadcast %cst_71 : f32 to vector<1x128xf32>
    %209 = arith.subf %208, %207 : vector<1x128xf32>
    %210 = math.exp %209 : vector<1x128xf32>
    %cst_72 = arith.constant 1.000000e+00 : f32
    %211 = vector.broadcast %cst_72 : f32 to vector<1x128xf32>
    %212 = arith.addf %211, %210 : vector<1x128xf32>
    %cst_73 = arith.constant 1.000000e+00 : f32
    %213 = vector.broadcast %cst_73 : f32 to vector<1x128xf32>
    %214 = arith.divf %213, %212 : vector<1x128xf32>
    %215 = arith.mulf %204, %181 : vector<1x128xf32>
    %216 = arith.mulf %196, %206 : vector<1x128xf32>
    %217 = arith.addf %215, %216 : vector<1x128xf32>
    %218 = math.tanh %217 : vector<1x128xf32>
    %219 = arith.mulf %214, %218 : vector<1x128xf32>
    %c6_i32 = arith.constant 6 : i32
    %220 = arith.index_cast %c6_i32 : i32 to index
    %c0_74 = arith.constant 0 : index
    %c0_75 = arith.constant 0 : index
    %221 = vector.load %arg0[%220, %c0_74, %c0_75] : memref<8x1x512xf32, #tpu.memory_space<vmem>>, vector<1x1x512xf32>
    %222 = vector.shape_cast %221 : vector<1x1x512xf32> to vector<1x512xf32>
    %cst_76 = arith.constant dense<0.000000e+00> : vector<1x512xf32>
    %223 = tpu.matmul %219, %1, %cst_76 {dimension_numbers = #tpu.dot_dimension_numbers<[1], [0], [0], [1], [0, 0, 1, 1], [], []>} : vector<1x128xf32>, vector<128x512xf32>, vector<1x512xf32> -> vector<1x512xf32>
    %224 = arith.addf %222, %223 : vector<1x512xf32>
    %225 = vector.extract_strided_slice %224 {offsets = [0, 0], sizes = [1, 128], strides = [1, 1]} : vector<1x512xf32> to vector<1x128xf32>
    %cst_77 = arith.constant 0.000000e+00 : f32
    %226 = vector.broadcast %cst_77 : f32 to vector<1x128xf32>
    %227 = arith.subf %226, %225 : vector<1x128xf32>
    %228 = math.exp %227 : vector<1x128xf32>
    %cst_78 = arith.constant 1.000000e+00 : f32
    %229 = vector.broadcast %cst_78 : f32 to vector<1x128xf32>
    %230 = arith.addf %229, %228 : vector<1x128xf32>
    %cst_79 = arith.constant 1.000000e+00 : f32
    %231 = vector.broadcast %cst_79 : f32 to vector<1x128xf32>
    %232 = arith.divf %231, %230 : vector<1x128xf32>
    %233 = vector.extract_strided_slice %224 {offsets = [0, 128], sizes = [1, 128], strides = [1, 1]} : vector<1x512xf32> to vector<1x128xf32>
    %cst_80 = arith.constant 0.000000e+00 : f32
    %234 = vector.broadcast %cst_80 : f32 to vector<1x128xf32>
    %235 = arith.subf %234, %233 : vector<1x128xf32>
    %236 = math.exp %235 : vector<1x128xf32>
    %cst_81 = arith.constant 1.000000e+00 : f32
    %237 = vector.broadcast %cst_81 : f32 to vector<1x128xf32>
    %238 = arith.addf %237, %236 : vector<1x128xf32>
    %cst_82 = arith.constant 1.000000e+00 : f32
    %239 = vector.broadcast %cst_82 : f32 to vector<1x128xf32>
    %240 = arith.divf %239, %238 : vector<1x128xf32>
    %241 = vector.extract_strided_slice %224 {offsets = [0, 256], sizes = [1, 128], strides = [1, 1]} : vector<1x512xf32> to vector<1x128xf32>
    %242 = math.tanh %241 : vector<1x128xf32>
    %243 = vector.extract_strided_slice %224 {offsets = [0, 384], sizes = [1, 128], strides = [1, 1]} : vector<1x512xf32> to vector<1x128xf32>
    %cst_83 = arith.constant 0.000000e+00 : f32
    %244 = vector.broadcast %cst_83 : f32 to vector<1x128xf32>
    %245 = arith.subf %244, %243 : vector<1x128xf32>
    %246 = math.exp %245 : vector<1x128xf32>
    %cst_84 = arith.constant 1.000000e+00 : f32
    %247 = vector.broadcast %cst_84 : f32 to vector<1x128xf32>
    %248 = arith.addf %247, %246 : vector<1x128xf32>
    %cst_85 = arith.constant 1.000000e+00 : f32
    %249 = vector.broadcast %cst_85 : f32 to vector<1x128xf32>
    %250 = arith.divf %249, %248 : vector<1x128xf32>
    %251 = arith.mulf %240, %217 : vector<1x128xf32>
    %252 = arith.mulf %232, %242 : vector<1x128xf32>
    %253 = arith.addf %251, %252 : vector<1x128xf32>
    %254 = math.tanh %253 : vector<1x128xf32>
    %255 = arith.mulf %250, %254 : vector<1x128xf32>
    %c7_i32 = arith.constant 7 : i32
    %256 = arith.index_cast %c7_i32 : i32 to index
    %c0_86 = arith.constant 0 : index
    %c0_87 = arith.constant 0 : index
    %257 = vector.load %arg0[%256, %c0_86, %c0_87] : memref<8x1x512xf32, #tpu.memory_space<vmem>>, vector<1x1x512xf32>
    %258 = vector.shape_cast %257 : vector<1x1x512xf32> to vector<1x512xf32>
    %cst_88 = arith.constant dense<0.000000e+00> : vector<1x512xf32>
    %259 = tpu.matmul %255, %1, %cst_88 {dimension_numbers = #tpu.dot_dimension_numbers<[1], [0], [0], [1], [0, 0, 1, 1], [], []>} : vector<1x128xf32>, vector<128x512xf32>, vector<1x512xf32> -> vector<1x512xf32>
    %260 = arith.addf %258, %259 : vector<1x512xf32>
    %261 = vector.extract_strided_slice %260 {offsets = [0, 0], sizes = [1, 128], strides = [1, 1]} : vector<1x512xf32> to vector<1x128xf32>
    %cst_89 = arith.constant 0.000000e+00 : f32
    %262 = vector.broadcast %cst_89 : f32 to vector<1x128xf32>
    %263 = arith.subf %262, %261 : vector<1x128xf32>
    %264 = math.exp %263 : vector<1x128xf32>
    %cst_90 = arith.constant 1.000000e+00 : f32
    %265 = vector.broadcast %cst_90 : f32 to vector<1x128xf32>
    %266 = arith.addf %265, %264 : vector<1x128xf32>
    %cst_91 = arith.constant 1.000000e+00 : f32
    %267 = vector.broadcast %cst_91 : f32 to vector<1x128xf32>
    %268 = arith.divf %267, %266 : vector<1x128xf32>
    %269 = vector.extract_strided_slice %260 {offsets = [0, 128], sizes = [1, 128], strides = [1, 1]} : vector<1x512xf32> to vector<1x128xf32>
    %cst_92 = arith.constant 0.000000e+00 : f32
    %270 = vector.broadcast %cst_92 : f32 to vector<1x128xf32>
    %271 = arith.subf %270, %269 : vector<1x128xf32>
    %272 = math.exp %271 : vector<1x128xf32>
    %cst_93 = arith.constant 1.000000e+00 : f32
    %273 = vector.broadcast %cst_93 : f32 to vector<1x128xf32>
    %274 = arith.addf %273, %272 : vector<1x128xf32>
    %cst_94 = arith.constant 1.000000e+00 : f32
    %275 = vector.broadcast %cst_94 : f32 to vector<1x128xf32>
    %276 = arith.divf %275, %274 : vector<1x128xf32>
    %277 = vector.extract_strided_slice %260 {offsets = [0, 256], sizes = [1, 128], strides = [1, 1]} : vector<1x512xf32> to vector<1x128xf32>
    %278 = math.tanh %277 : vector<1x128xf32>
    %279 = vector.extract_strided_slice %260 {offsets = [0, 384], sizes = [1, 128], strides = [1, 1]} : vector<1x512xf32> to vector<1x128xf32>
    %cst_95 = arith.constant 0.000000e+00 : f32
    %280 = vector.broadcast %cst_95 : f32 to vector<1x128xf32>
    %281 = arith.subf %280, %279 : vector<1x128xf32>
    %282 = math.exp %281 : vector<1x128xf32>
    %cst_96 = arith.constant 1.000000e+00 : f32
    %283 = vector.broadcast %cst_96 : f32 to vector<1x128xf32>
    %284 = arith.addf %283, %282 : vector<1x128xf32>
    %cst_97 = arith.constant 1.000000e+00 : f32
    %285 = vector.broadcast %cst_97 : f32 to vector<1x128xf32>
    %286 = arith.divf %285, %284 : vector<1x128xf32>
    %287 = arith.mulf %276, %253 : vector<1x128xf32>
    %288 = arith.mulf %268, %278 : vector<1x128xf32>
    %289 = arith.addf %287, %288 : vector<1x128xf32>
    %290 = math.tanh %289 : vector<1x128xf32>
    %291 = arith.mulf %286, %290 : vector<1x128xf32>
    %c8_i32 = arith.constant 8 : i32
    %c0_98 = arith.constant 0 : index
    %c0_99 = arith.constant 0 : index
    %292 = vector.load %arg3[%c0_98, %c0_99] : memref<128x128xbf16, #tpu.memory_space<vmem>>, vector<128x128xbf16>
    %293 = arith.extf %292 : vector<128x128xbf16> to vector<128x128xf32>
    %cst_100 = arith.constant dense<0.000000e+00> : vector<1x128xf32>
    %294 = tpu.matmul %291, %293, %cst_100 {dimension_numbers = #tpu.dot_dimension_numbers<[1], [0], [0], [1], [0, 0, 1, 1], [], []>} : vector<1x128xf32>, vector<128x128xf32>, vector<1x128xf32> -> vector<1x128xf32>
    %c0_101 = arith.constant 0 : index
    %c0_102 = arith.constant 0 : index
    %295 = vector.load %arg2[%c0_101, %c0_102] : memref<1x128xf32, #tpu.memory_space<vmem>>, vector<1x128xf32>
    %c0_103 = arith.constant 0 : index
    %c0_104 = arith.constant 0 : index
    %296 = vector.load %arg4[%c0_103, %c0_104] : memref<128x128xbf16, #tpu.memory_space<vmem>>, vector<128x128xbf16>
    %297 = arith.extf %296 : vector<128x128xbf16> to vector<128x128xf32>
    %cst_105 = arith.constant dense<0.000000e+00> : vector<1x128xf32>
    %298 = tpu.matmul %295, %297, %cst_105 {dimension_numbers = #tpu.dot_dimension_numbers<[1], [0], [0], [1], [0, 0, 1, 1], [], []>} : vector<1x128xf32>, vector<128x128xf32>, vector<1x128xf32> -> vector<1x128xf32>
    %299 = arith.addf %294, %298 : vector<1x128xf32>
    %c0_106 = arith.constant 0 : index
    %c0_107 = arith.constant 0 : index
    %300 = vector.load %arg5[%c0_106, %c0_107] : memref<1x128xf32, #tpu.memory_space<vmem>>, vector<1x128xf32>
    %301 = arith.addf %299, %300 : vector<1x128xf32>
    %cst_108 = arith.constant 0.000000e+00 : f32
    %302 = vector.broadcast %cst_108 : f32 to vector<1x128xf32>
    %303 = arith.maximumf %301, %302 : vector<1x128xf32>
    %c0_109 = arith.constant 0 : index
    %c0_110 = arith.constant 0 : index
    %304 = vector.load %arg6[%c0_109, %c0_110] : memref<128x128xbf16, #tpu.memory_space<vmem>>, vector<128x128xbf16>
    %305 = arith.extf %304 : vector<128x128xbf16> to vector<128x128xf32>
    %cst_111 = arith.constant dense<0.000000e+00> : vector<1x128xf32>
    %306 = tpu.matmul %303, %305, %cst_111 {dimension_numbers = #tpu.dot_dimension_numbers<[1], [0], [0], [1], [0, 0, 1, 1], [], []>} : vector<1x128xf32>, vector<128x128xf32>, vector<1x128xf32> -> vector<1x128xf32>
    %c0_112 = arith.constant 0 : index
    %c0_113 = arith.constant 0 : index
    %307 = vector.load %arg7[%c0_112, %c0_113] : memref<1x128xf32, #tpu.memory_space<vmem>>, vector<1x128xf32>
    %308 = arith.addf %306, %307 : vector<1x128xf32>
    %cst_114 = arith.constant 0.000000e+00 : f32
    %309 = vector.broadcast %cst_114 : f32 to vector<1x128xf32>
    %310 = arith.maximumf %308, %309 : vector<1x128xf32>
    %c0_115 = arith.constant 0 : index
    %c0_116 = arith.constant 0 : index
    %311 = vector.load %arg8[%c0_115, %c0_116] : memref<128x384xbf16, #tpu.memory_space<vmem>>, vector<128x384xbf16>
    %312 = arith.extf %311 : vector<128x384xbf16> to vector<128x384xf32>
    %cst_117 = arith.constant dense<0.000000e+00> : vector<1x384xf32>
    %313 = tpu.matmul %310, %312, %cst_117 {dimension_numbers = #tpu.dot_dimension_numbers<[1], [0], [0], [1], [0, 0, 1, 1], [], []>} : vector<1x128xf32>, vector<128x384xf32>, vector<1x384xf32> -> vector<1x384xf32>
    %c0_118 = arith.constant 0 : index
    %c0_119 = arith.constant 0 : index
    %314 = vector.load %arg9[%c0_118, %c0_119] : memref<1x384xf32, #tpu.memory_space<vmem>>, vector<1x384xf32>
    %315 = arith.addf %313, %314 : vector<1x384xf32>
    %c0_120 = arith.constant 0 : index
    %c0_121 = arith.constant 0 : index
    %316 = vector.load %arg10[%c0_120, %c0_121] : memref<1x384xf32, #tpu.memory_space<vmem>>, vector<1x384xf32>
    tpu.vector_store %arg10[%c0_120, %c0_121], %315 {strides = array<i32>} : memref<1x384xf32, #tpu.memory_space<vmem>>, vector<1x384xf32>,
    return
  }
}

</mosaic_0001>

<llo_original>
// kernel: mlp_projector_forward.1
$region0: #{mlp_projector_forward.1}
  #allocation0 [shape = 'u32[]', space=smem, size = 0x4, offset = 0x4, fixed_abs, tag = 'smem constant byte address 0x4 - core index']
  #allocation1 [shape = 'u32[72,128]{1,0:T(1,128)}', space=vmem, size = 0x9000, scoped, tag = 'internal scratch']
  %s0 = inlined_call_operand.vmem [shape: f32[8,1,512], index: 0, kind: input, shape index: {}]
  %s1 = inlined_call_operand.vmem [shape: bf16[128,512], index: 1, kind: input, shape index: {}]
  %s2 = inlined_call_operand.vmem [shape: f32[1,128], index: 2, kind: input, shape index: {}]
  %s3 = inlined_call_operand.hbm [shape: bf16[128,128], index: 3, kind: input, shape index: {}]
  %s4 = inlined_call_operand.hbm [shape: bf16[128,128], index: 4, kind: input, shape index: {}]
  %s5 = inlined_call_operand.vmem [shape: f32[1,128], index: 5, kind: input, shape index: {}]
  %s6 = inlined_call_operand.hbm [shape: bf16[128,128], index: 6, kind: input, shape index: {}]
  %s7 = inlined_call_operand.vmem [shape: f32[1,128], index: 7, kind: input, shape index: {}]
  %s8 = inlined_call_operand.vmem [shape: bf16[128,384], index: 8, kind: input, shape index: {}]
  %s9 = inlined_call_operand.vmem [shape: f32[1,384], index: 9, kind: input, shape index: {}]
  %s10 = inlined_call_operand.vmem [shape: f32[1,384], index: 10, kind: output, shape index: {}]
  %s11 = sld [smem:[#allocation0]]
  $region62: #{mlp_projector_forward.1} parent=0
    _
  %s13 = ssub.s32 1, %s11
  %s14 = scalar_select 0, %s13, %s11
  $region1: #{mlp_projector_forward.1} parent=0
    #allocation2 [shape = 'u8[32768]{0}', space=vmem, size = 0x8000, scoped, tag = 'input window, operand 3, single buffered']
    #allocation3 [shape = 's32[1]{0}', space=sflag, size = 0x4, scoped, tag = 'scoped memory for mlp_projector_forward.1']
    #allocation4 [shape = 'u8[32768]{0}', space=vmem, size = 0x8000, scoped, tag = 'input window, operand 4, single buffered']
    #allocation5 [shape = 's32[1]{0}', space=sflag, size = 0x4, scoped, tag = 'scoped memory for mlp_projector_forward.1']
    #allocation6 [shape = 'u8[32768]{0}', space=vmem, size = 0x8000, scoped, tag = 'input window, operand 6, single buffered']
    %15 = vsyncpa [#allocation3], 0
    %16 = vsyncpa [#allocation5], 0
    // Predicated region
    $region2: #{mlp_projector_forward.1} parent=1 // pred_check
      _
    $region3: #{mlp_projector_forward.1} parent=1 // pred_check_branch
      %18 = sbr.rel (0) target = $region5
    $region4: #{mlp_projector_forward.1} parent=1 // pred_region
      _
    $region5: #{mlp_projector_forward.1} parent=1 // pred_fallthru
      _
    // Predicated region
    $region6: #{mlp_projector_forward.1} parent=1 // pred_check
      _
    $region7: #{mlp_projector_forward.1} parent=1 // pred_check_branch
      %20 = sbr.rel (0) target = $region9
    $region8: #{mlp_projector_forward.1} parent=1 // pred_region
      _
    $region9: #{mlp_projector_forward.1} parent=1 // pred_fallthru
      _
    // Predicated region
    $region10: #{mlp_projector_forward.1} parent=1 // pred_check
      _
    $region11: #{mlp_projector_forward.1} parent=1 // pred_check_branch
      %22 = sbr.rel (0) target = $region13
    $region12: #{mlp_projector_forward.1} parent=1 // pred_region
      _
    $region13: #{mlp_projector_forward.1} parent=1 // pred_fallthru
      _
    // Predicated region
    $region14: #{mlp_projector_forward.1} parent=1 // pred_check
      _
    $region15: #{mlp_projector_forward.1} parent=1 // pred_check_branch
      %24 = sbr.rel (0) target = $region17
    $region16: #{mlp_projector_forward.1} parent=1 // pred_region
      %26 = vsyncadd [#allocation3], 0
      %s27 = sshll.u32 %s3, 4
      %s28 = int_to_ptr.hbm [resolvable:$true] %s27
      %s29 = sshll.u32 [#allocation2], 4
      %s30 = int_to_ptr.vmem [resolvable:$true] %s29
      %35 = dma.hbm_to_vmem [thread:$0]  %s28, 1024, %s30, [#allocation3], 64, 64, 4
    $region17: #{mlp_projector_forward.1} parent=1 // pred_fallthru
      _
    // Predicated region
    $region18: #{mlp_projector_forward.1} parent=1 // pred_check
      _
    $region19: #{mlp_projector_forward.1} parent=1 // pred_check_branch
      %37 = sbr.rel (0) target = $region21
    $region20: #{mlp_projector_forward.1} parent=1 // pred_region
      %39 = vsyncadd [#allocation5], 0
      %s40 = sshll.u32 %s4, 4
      %s41 = int_to_ptr.hbm [resolvable:$true] %s40
      %s42 = sshll.u32 [#allocation4], 4
      %s43 = int_to_ptr.vmem [resolvable:$true] %s42
      %48 = dma.hbm_to_vmem [thread:$0]  %s41, 1024, %s43, [#allocation5], 64, 64, 4
    $region21: #{mlp_projector_forward.1} parent=1 // pred_fallthru
      _
    // Predicated region
    $region22: #{mlp_projector_forward.1} parent=1 // pred_check
      _
    $region23: #{mlp_projector_forward.1} parent=1 // pred_check_branch
      %50 = sbr.rel (0) target = $region25
    $region24: #{mlp_projector_forward.1} parent=1 // pred_region
      _
    $region25: #{mlp_projector_forward.1} parent=1 // pred_fallthru
      _
    // Predicated region
    $region26: #{mlp_projector_forward.1} parent=1 // pred_check
      _
    $region27: #{mlp_projector_forward.1} parent=1 // pred_check_branch
      %52 = sbr.rel (0) target = $region29
    $region28: #{mlp_projector_forward.1} parent=1 // pred_region
      %54 = vsyncadd [#allocation5], 0
      %s55 = sshll.u32 %s6, 4
      %s56 = int_to_ptr.hbm [resolvable:$true] %s55
      %s57 = sshll.u32 [#allocation6], 4
      %s58 = int_to_ptr.vmem [resolvable:$true] %s57
      %63 = dma.hbm_to_vmem [thread:$0]  %s56, 1024, %s58, [#allocation5], 64, 64, 4
    $region29: #{mlp_projector_forward.1} parent=1 // pred_fallthru
      _
    // Predicated region
    $region30: #{mlp_projector_forward.1} parent=1 // pred_check
      _
    $region31: #{mlp_projector_forward.1} parent=1 // pred_check_branch
      %65 = sbr.rel (0) target = $region33
    $region32: #{mlp_projector_forward.1} parent=1 // pred_region
      _
    $region33: #{mlp_projector_forward.1} parent=1 // pred_fallthru
      _
    // Predicated region
    $region34: #{mlp_projector_forward.1} parent=1 // pred_check
      _
    $region35: #{mlp_projector_forward.1} parent=1 // pred_check_branch
      %67 = sbr.rel (0) target = $region37
    $region36: #{mlp_projector_forward.1} parent=1 // pred_region
      _
    $region37: #{mlp_projector_forward.1} parent=1 // pred_fallthru
      _
    // Predicated region
    $region38: #{mlp_projector_forward.1} parent=1 // pred_check
      _
    $region39: #{mlp_projector_forward.1} parent=1 // pred_check_branch
      %69 = sbr.rel (0) target = $region41
    $region40: #{mlp_projector_forward.1} parent=1 // pred_region
      _
    $region41: #{mlp_projector_forward.1} parent=1 // pred_fallthru
      _
    // Predicated region
    $region42: #{mlp_projector_forward.1} parent=1 // pred_check
      _
    $region43: #{mlp_projector_forward.1} parent=1 // pred_check_branch
      %71 = sbr.rel (0) target = $region45
    $region44: #{mlp_projector_forward.1} parent=1 // pred_region
      %73 = dma.done [#allocation3], 1024
    $region45: #{mlp_projector_forward.1} parent=1 // pred_fallthru
      _
    // Predicated region
    $region46: #{mlp_projector_forward.1} parent=1 // pred_check
      _
    $region47: #{mlp_projector_forward.1} parent=1 // pred_check_branch
      %75 = sbr.rel (0) target = $region49
    $region48: #{mlp_projector_forward.1} parent=1 // pred_region
      %77 = dma.done [#allocation5], 1024
    $region49: #{mlp_projector_forward.1} parent=1 // pred_fallthru
      _
    // Predicated region
    $region50: #{mlp_projector_forward.1} parent=1 // pred_check
      _
    $region51: #{mlp_projector_forward.1} parent=1 // pred_check_branch
      %79 = sbr.rel (0) target = $region53
    $region52: #{mlp_projector_forward.1} parent=1 // pred_region
      %81 = dma.done [#allocation5], 1024
    $region53: #{mlp_projector_forward.1} parent=1 // pred_fallthru
      _
    %v82 = vld [vmem:[%s1] sm:$0xff]
    %v83 = vld [vmem:[%s1 + $0x8] sm:$0xff]
    %v84 = vld [vmem:[%s1 + $0x10] sm:$0xff]
    %v85 = vld [vmem:[%s1 + $0x18] sm:$0xff]
    %v86 = vld [vmem:[%s1 + $0x20] sm:$0xff]
    %v87 = vld [vmem:[%s1 + $0x28] sm:$0xff]
    %v88 = vld [vmem:[%s1 + $0x30] sm:$0xff]
    %v89 = vld [vmem:[%s1 + $0x38] sm:$0xff]
    %v90 = vld [vmem:[%s1 + $0x40] sm:$0xff]
    %v91 = vld [vmem:[%s1 + $0x48] sm:$0xff]
    %v92 = vld [vmem:[%s1 + $0x50] sm:$0xff]
    %v93 = vld [vmem:[%s1 + $0x58] sm:$0xff]
    %v94 = vld [vmem:[%s1 + $0x60] sm:$0xff]
    %v95 = vld [vmem:[%s1 + $0x68] sm:$0xff]
    %v96 = vld [vmem:[%s1 + $0x70] sm:$0xff]
    %v97 = vld [vmem:[%s1 + $0x78] sm:$0xff]
    %v98 = vld [vmem:[%s1 + $0x80] sm:$0xff]
    %v99 = vld [vmem:[%s1 + $0x88] sm:$0xff]
    %v100 = vld [vmem:[%s1 + $0x90] sm:$0xff]
    %v101 = vld [vmem:[%s1 + $0x98] sm:$0xff]
    %v102 = vld [vmem:[%s1 + $0xa0] sm:$0xff]
    %v103 = vld [vmem:[%s1 + $0xa8] sm:$0xff]
    %v104 = vld [vmem:[%s1 + $0xb0] sm:$0xff]
    %v105 = vld [vmem:[%s1 + $0xb8] sm:$0xff]
    %v106 = vld [vmem:[%s1 + $0xc0] sm:$0xff]
    %v107 = vld [vmem:[%s1 + $0xc8] sm:$0xff]
    %v108 = vld [vmem:[%s1 + $0xd0] sm:$0xff]
    %v109 = vld [vmem:[%s1 + $0xd8] sm:$0xff]
    %v110 = vld [vmem:[%s1 + $0xe0] sm:$0xff]
    %v111 = vld [vmem:[%s1 + $0xe8] sm:$0xff]
    %v112 = vld [vmem:[%s1 + $0xf0] sm:$0xff]
    %v113 = vld [vmem:[%s1 + $0xf8] sm:$0xff]
    %v114 = vunpack.c.l.bf16 %v82
    %v115 = vunpack.c.h.bf16 %v82
    %v116 = vunpack.c.l.bf16 %v83
    %v117 = vunpack.c.h.bf16 %v83
    %v118 = vunpack.c.l.bf16 %v84
    %v119 = vunpack.c.h.bf16 %v84
    %v120 = vunpack.c.l.bf16 %v85
    %v121 = vunpack.c.h.bf16 %v85
    %v122 = vunpack.c.l.bf16 %v86
    %v123 = vunpack.c.h.bf16 %v86
    %v124 = vunpack.c.l.bf16 %v87
    %v125 = vunpack.c.h.bf16 %v87
    %v126 = vunpack.c.l.bf16 %v88
    %v127 = vunpack.c.h.bf16 %v88
    %v128 = vunpack.c.l.bf16 %v89
    %v129 = vunpack.c.h.bf16 %v89
    %v130 = vunpack.c.l.bf16 %v90
    %v131 = vunpack.c.h.bf16 %v90
    %v132 = vunpack.c.l.bf16 %v91
    %v133 = vunpack.c.h.bf16 %v91
    %v134 = vunpack.c.l.bf16 %v92
    %v135 = vunpack.c.h.bf16 %v92
    %v136 = vunpack.c.l.bf16 %v93
    %v137 = vunpack.c.h.bf16 %v93
    %v138 = vunpack.c.l.bf16 %v94
    %v139 = vunpack.c.h.bf16 %v94
    %v140 = vunpack.c.l.bf16 %v95
    %v141 = vunpack.c.h.bf16 %v95
    %v142 = vunpack.c.l.bf16 %v96
    %v143 = vunpack.c.h.bf16 %v96
    %v144 = vunpack.c.l.bf16 %v97
    %v145 = vunpack.c.h.bf16 %v97
    %v146 = vunpack.c.l.bf16 %v98
    %v147 = vunpack.c.h.bf16 %v98
    %v148 = vunpack.c.l.bf16 %v99
    %v149 = vunpack.c.h.bf16 %v99
    %v150 = vunpack.c.l.bf16 %v100
    %v151 = vunpack.c.h.bf16 %v100
    %v152 = vunpack.c.l.bf16 %v101
    %v153 = vunpack.c.h.bf16 %v101
    %v154 = vunpack.c.l.bf16 %v102
    %v155 = vunpack.c.h.bf16 %v102
    %v156 = vunpack.c.l.bf16 %v103
    %v157 = vunpack.c.h.bf16 %v103
    %v158 = vunpack.c.l.bf16 %v104
    %v159 = vunpack.c.h.bf16 %v104
    %v160 = vunpack.c.l.bf16 %v105
    %v161 = vunpack.c.h.bf16 %v105
    %v162 = vunpack.c.l.bf16 %v106
    %v163 = vunpack.c.h.bf16 %v106
    %v164 = vunpack.c.l.bf16 %v107
    %v165 = vunpack.c.h.bf16 %v107
    %v166 = vunpack.c.l.bf16 %v108
    %v167 = vunpack.c.h.bf16 %v108
    %v168 = vunpack.c.l.bf16 %v109
    %v169 = vunpack.c.h.bf16 %v109
    %v170 = vunpack.c.l.bf16 %v110
    %v171 = vunpack.c.h.bf16 %v110
    %v172 = vunpack.c.l.bf16 %v111
    %v173 = vunpack.c.h.bf16 %v111
    %v174 = vunpack.c.l.bf16 %v112
    %v175 = vunpack.c.h.bf16 %v112
    %v176 = vunpack.c.l.bf16 %v113
    %v177 = vunpack.c.h.bf16 %v113
    %v178 = vld [vmem:[%s0] sm:$0xf]
    %179 = vmatpush.msra.mxu0 %v174
    %180 = vmatpush.msra.mxu0 %v170
    %181 = vmatpush.msra.mxu0 %v166
    %182 = vmatpush.msra.mxu0 %v162
    %183 = vmatpush.msra.mxu0 %v158
    %184 = vmatpush.msra.mxu0 %v154
    %185 = vmatpush.msra.mxu0 %v150
    %186 = vmatpush.msra.mxu0 %v146
    %187 = vmatpush.msra.mxu0 %v142
    %188 = vmatpush.msra.mxu0 %v138
    %189 = vmatpush.msra.mxu0 %v134
    %190 = vmatpush.msra.mxu0 %v130
    %191 = vmatpush.msra.mxu0 %v126
    %192 = vmatpush.msra.mxu0 %v122
    %193 = vmatpush.msra.mxu0 %v118
    %194 = vmatpush.msra.mxu0 %v114
    %195 = vmatmul.f32.gmra.mxu0 0.0
    %v196 = vpop.f32.mrf.mxu0
    %v197 = vadd.f32 0.0, %v196
    %198 = vdwg.mxu0
    %199 = vmatpush.msra.mxu0 %v175
    %200 = vmatpush.msra.mxu0 %v171
    %201 = vmatpush.msra.mxu0 %v167
    %202 = vmatpush.msra.mxu0 %v163
    %203 = vmatpush.msra.mxu0 %v159
    %204 = vmatpush.msra.mxu0 %v155
    %205 = vmatpush.msra.mxu0 %v151
    %206 = vmatpush.msra.mxu0 %v147
    %207 = vmatpush.msra.mxu0 %v143
    %208 = vmatpush.msra.mxu0 %v139
    %209 = vmatpush.msra.mxu0 %v135
    %210 = vmatpush.msra.mxu0 %v131
    %211 = vmatpush.msra.mxu0 %v127
    %212 = vmatpush.msra.mxu0 %v123
    %213 = vmatpush.msra.mxu0 %v119
    %214 = vmatpush.msra.mxu0 %v115
    %215 = vmatmul.f32.gmra.mxu0 0.0
    %v216 = vpop.f32.mrf.mxu0
    %v217 = vadd.f32 0.0, %v216
    %218 = vdwg.mxu0
    %219 = vmatpush.msra.mxu0 %v176
    %220 = vmatpush.msra.mxu0 %v172
    %221 = vmatpush.msra.mxu0 %v168
    %222 = vmatpush.msra.mxu0 %v164
    %223 = vmatpush.msra.mxu0 %v160
    %224 = vmatpush.msra.mxu0 %v156
    %225 = vmatpush.msra.mxu0 %v152
    %226 = vmatpush.msra.mxu0 %v148
    %227 = vmatpush.msra.mxu0 %v144
    %228 = vmatpush.msra.mxu0 %v140
    %229 = vmatpush.msra.mxu0 %v136
    %230 = vmatpush.msra.mxu0 %v132
    %231 = vmatpush.msra.mxu0 %v128
    %232 = vmatpush.msra.mxu0 %v124
    %233 = vmatpush.msra.mxu0 %v120
    %234 = vmatpush.msra.mxu0 %v116
    %235 = vmatmul.f32.gmra.mxu0 0.0
    %v236 = vpop.f32.mrf.mxu0
    %v237 = vadd.f32 0.0, %v236
    %238 = vdwg.mxu0
    %239 = vmatpush.msra.mxu0 %v177
    %240 = vmatpush.msra.mxu0 %v173
    %241 = vmatpush.msra.mxu0 %v169
    %242 = vmatpush.msra.mxu0 %v165
    %243 = vmatpush.msra.mxu0 %v161
    %244 = vmatpush.msra.mxu0 %v157
    %245 = vmatpush.msra.mxu0 %v153
    %246 = vmatpush.msra.mxu0 %v149
    %247 = vmatpush.msra.mxu0 %v145
    %248 = vmatpush.msra.mxu0 %v141
    %249 = vmatpush.msra.mxu0 %v137
    %250 = vmatpush.msra.mxu0 %v133
    %251 = vmatpush.msra.mxu0 %v129
    %252 = vmatpush.msra.mxu0 %v125
    %253 = vmatpush.msra.mxu0 %v121
    %254 = vmatpush.msra.mxu0 %v117
    %255 = vmatmul.f32.gmra.mxu0 0.0
    %v256 = vpop.f32.mrf.mxu0
    %v257 = vadd.f32 0.0, %v256
    %258 = vdwg.mxu0
    %v263 = vrot.slane %v217, 7
    %v264 = vrot.slane %v237, 6
    %v265 = vrot.slane %v257, 5
    %vm266 = vcmask 1040384
    %v267 = vsel %vm266, %v197, %v263
    %vm268 = vcmask 1042434
    %v269 = vsel %vm268, %v264, %v265
    %vm270 = vcmask 1041408
    %v271 = vsel %vm270, %v267, %v269
    %v273 = vadd.f32 %v178, %v271
    %v274 = vsub.f32 0.0, %v273
    %v275 = vmul.f32 %v274, 1.442695
    %v276 = vpow.pop %v275
    %v277 = vadd.f32 %v276, 1.0
    %v278 = vrcp.pop %v277
    %v279 = vmul.f32 %v277, %v278
    %v280 = vsub.f32 1.0, %v279
    %v281 = vmul.f32 %v278, %v280
    %v282 = vadd.f32 %v278, %v281
    %vm283 = vweird.f32 %v277
    %vm284 = vweird.f32 %v278
    %vm285 = vmor %vm283, %vm284
    %v286 = vsel %vm285, %v278, %v282
    %v287 = vand.u32 2147483647, %v277
    %vm288 = vcmp.eq.f32.partialorder %v287, 8.507059e+37
    %v289 = vand.u32 %v277, 2147483648
    %v290 = vor.u32 1.1754944e-38, %v289
    %v291 = vsel %vm288, %v290, %v286
    %v292 = vmul.f32 1.0, %v291
    %v294 = vrot.slane %v273, 1
    %v296 = vsub.f32 0.0, %v294
    %v297 = vmul.f32 %v296, 1.442695
    %v298 = vpow.pop %v297
    %v299 = vadd.f32 %v298, 1.0
    %v300 = vrcp.pop %v299
    %v301 = vmul.f32 %v299, %v300
    %v302 = vsub.f32 1.0, %v301
    %v303 = vmul.f32 %v300, %v302
    %v304 = vadd.f32 %v300, %v303
    %vm305 = vweird.f32 %v299
    %vm306 = vweird.f32 %v300
    %vm307 = vmor %vm305, %vm306
    %v308 = vsel %vm307, %v300, %v304
    %v309 = vand.u32 2147483647, %v299
    %vm310 = vcmp.eq.f32.partialorder %v309, 8.507059e+37
    %v311 = vand.u32 %v299, 2147483648
    %v312 = vor.u32 1.1754944e-38, %v311
    %v313 = vsel %vm310, %v312, %v308
    %v314 = vmul.f32 1.0, %v313
    %v315 = vrot.slane %v273, 2
    %v317 = vtanh.pop %v315
    %v318 = vrot.slane %v273, 3
    %v320 = vsub.f32 0.0, %v318
    %v321 = vmul.f32 %v320, 1.442695
    %v322 = vpow.pop %v321
    %v323 = vadd.f32 %v322, 1.0
    %v324 = vrcp.pop %v323
    %v325 = vmul.f32 %v323, %v324
    %v326 = vsub.f32 1.0, %v325
    %v327 = vmul.f32 %v324, %v326
    %v328 = vadd.f32 %v324, %v327
    %vm329 = vweird.f32 %v323
    %vm330 = vweird.f32 %v324
    %vm331 = vmor %vm329, %vm330
    %v332 = vsel %vm331, %v324, %v328
    %v333 = vand.u32 2147483647, %v323
    %vm334 = vcmp.eq.f32.partialorder %v333, 8.507059e+37
    %v335 = vand.u32 %v323, 2147483648
    %v336 = vor.u32 1.1754944e-38, %v335
    %v337 = vsel %vm334, %v336, %v332
    %v338 = vmul.f32 1.0, %v337
    %v339 = vmul.f32 %v314, 0.0
    %v340 = vmul.f32 %v292, %v317
    %v341 = vadd.f32 %v339, %v340
    %v342 = vtanh.pop %v341
    %v343 = vmul.f32 %v338, %v342
    %s344 = scalar_lea.vmem %s0, 4
    %v345 = vld [vmem:[%s344] sm:$0xf]
    %346 = vmatpush.msra.mxu0 %v174
    %347 = vmatpush.msra.mxu0 %v170
    %348 = vmatpush.msra.mxu0 %v166
    %349 = vmatpush.msra.mxu0 %v162
    %350 = vmatpush.msra.mxu0 %v158
    %351 = vmatpush.msra.mxu0 %v154
    %352 = vmatpush.msra.mxu0 %v150
    %353 = vmatpush.msra.mxu0 %v146
    %354 = vmatpush.msra.mxu0 %v142
    %355 = vmatpush.msra.mxu0 %v138
    %356 = vmatpush.msra.mxu0 %v134
    %357 = vmatpush.msra.mxu0 %v130
    %358 = vmatpush.msra.mxu0 %v126
    %359 = vmatpush.msra.mxu0 %v122
    %360 = vmatpush.msra.mxu0 %v118
    %361 = vmatpush.msra.mxu0 %v114
    %362 = vmatmul.f32.gmra.mxu0 %v343
    %v363 = vpop.f32.mrf.mxu0
    %v364 = vadd.f32 0.0, %v363
    %365 = vdwg.mxu0
    %366 = vmatpush.msra.mxu0 %v175
    %367 = vmatpush.msra.mxu0 %v171
    %368 = vmatpush.msra.mxu0 %v167
    %369 = vmatpush.msra.mxu0 %v163
    %370 = vmatpush.msra.mxu0 %v159
    %371 = vmatpush.msra.mxu0 %v155
    %372 = vmatpush.msra.mxu0 %v151
    %373 = vmatpush.msra.mxu0 %v147
    %374 = vmatpush.msra.mxu0 %v143
    %375 = vmatpush.msra.mxu0 %v139
    %376 = vmatpush.msra.mxu0 %v135
    %377 = vmatpush.msra.mxu0 %v131
    %378 = vmatpush.msra.mxu0 %v127
    %379 = vmatpush.msra.mxu0 %v123
    %380 = vmatpush.msra.mxu0 %v119
    %381 = vmatpush.msra.mxu0 %v115
    %382 = vmatmul.f32.gmra.mxu0 %v343
    %v383 = vpop.f32.mrf.mxu0
    %v384 = vadd.f32 0.0, %v383
    %385 = vdwg.mxu0
    %386 = vmatpush.msra.mxu0 %v176
    %387 = vmatpush.msra.mxu0 %v172
    %388 = vmatpush.msra.mxu0 %v168
    %389 = vmatpush.msra.mxu0 %v164
    %390 = vmatpush.msra.mxu0 %v160
    %391 = vmatpush.msra.mxu0 %v156
    %392 = vmatpush.msra.mxu0 %v152
    %393 = vmatpush.msra.mxu0 %v148
    %394 = vmatpush.msra.mxu0 %v144
    %395 = vmatpush.msra.mxu0 %v140
    %396 = vmatpush.msra.mxu0 %v136
    %397 = vmatpush.msra.mxu0 %v132
    %398 = vmatpush.msra.mxu0 %v128
    %399 = vmatpush.msra.mxu0 %v124
    %400 = vmatpush.msra.mxu0 %v120
    %401 = vmatpush.msra.mxu0 %v116
    %402 = vmatmul.f32.gmra.mxu0 %v343
    %v403 = vpop.f32.mrf.mxu0
    %v404 = vadd.f32 0.0, %v403
    %405 = vdwg.mxu0
    %406 = vmatpush.msra.mxu0 %v177
    %407 = vmatpush.msra.mxu0 %v173
    %408 = vmatpush.msra.mxu0 %v169
    %409 = vmatpush.msra.mxu0 %v165
    %410 = vmatpush.msra.mxu0 %v161
    %411 = vmatpush.msra.mxu0 %v157
    %412 = vmatpush.msra.mxu0 %v153
    %413 = vmatpush.msra.mxu0 %v149
    %414 = vmatpush.msra.mxu0 %v145
    %415 = vmatpush.msra.mxu0 %v141
    %416 = vmatpush.msra.mxu0 %v137
    %417 = vmatpush.msra.mxu0 %v133
    %418 = vmatpush.msra.mxu0 %v129
    %419 = vmatpush.msra.mxu0 %v125
    %420 = vmatpush.msra.mxu0 %v121
    %421 = vmatpush.msra.mxu0 %v117
    %422 = vmatmul.f32.gmra.mxu0 %v343
    %v423 = vpop.f32.mrf.mxu0
    %v424 = vadd.f32 0.0, %v423
    %425 = vdwg.mxu0
    %v430 = vrot.slane %v384, 7
    %v431 = vrot.slane %v404, 6
    %v432 = vrot.slane %v424, 5
    %v433 = vsel %vm266, %v364, %v430
    %v434 = vsel %vm268, %v431, %v432
    %v435 = vsel %vm270, %v433, %v434
    %v437 = vadd.f32 %v345, %v435
    %v438 = vsub.f32 0.0, %v437
    %v439 = vmul.f32 %v438, 1.442695
    %v440 = vpow.pop %v439
    %v441 = vadd.f32 %v440, 1.0
    %v442 = vrcp.pop %v441
    %v443 = vmul.f32 %v441, %v442
    %v444 = vsub.f32 1.0, %v443
    %v445 = vmul.f32 %v442, %v444
    %v446 = vadd.f32 %v442, %v445
    %vm447 = vweird.f32 %v441
    %vm448 = vweird.f32 %v442
    %vm449 = vmor %vm447, %vm448
    %v450 = vsel %vm449, %v442, %v446
    %v451 = vand.u32 2147483647, %v441
    %vm452 = vcmp.eq.f32.partialorder %v451, 8.507059e+37
    %v453 = vand.u32 %v441, 2147483648
    %v454 = vor.u32 1.1754944e-38, %v453
    %v455 = vsel %vm452, %v454, %v450
    %v456 = vmul.f32 1.0, %v455
    %v458 = vrot.slane %v437, 1
    %v460 = vsub.f32 0.0, %v458
    %v461 = vmul.f32 %v460, 1.442695
    %v462 = vpow.pop %v461
    %v463 = vadd.f32 %v462, 1.0
    %v464 = vrcp.pop %v463
    %v465 = vmul.f32 %v463, %v464
    %v466 = vsub.f32 1.0, %v465
    %v467 = vmul.f32 %v464, %v466
    %v468 = vadd.f32 %v464, %v467
    %vm469 = vweird.f32 %v463
    %vm470 = vweird.f32 %v464
    %vm471 = vmor %vm469, %vm470
    %v472 = vsel %vm471, %v464, %v468
    %v473 = vand.u32 2147483647, %v463
    %vm474 = vcmp.eq.f32.partialorder %v473, 8.507059e+37
    %v475 = vand.u32 %v463, 2147483648
    %v476 = vor.u32 1.1754944e-38, %v475
    %v477 = vsel %vm474, %v476, %v472
    %v478 = vmul.f32 1.0, %v477
    %v479 = vrot.slane %v437, 2
    %v481 = vtanh.pop %v479
    %v482 = vrot.slane %v437, 3
    %v484 = vsub.f32 0.0, %v482
    %v485 = vmul.f32 %v484, 1.442695
    %v486 = vpow.pop %v485
    %v487 = vadd.f32 %v486, 1.0
    %v488 = vrcp.pop %v487
    %v489 = vmul.f32 %v487, %v488
    %v490 = vsub.f32 1.0, %v489
    %v491 = vmul.f32 %v488, %v490
    %v492 = vadd.f32 %v488, %v491
    %vm493 = vweird.f32 %v487
    %vm494 = vweird.f32 %v488
    %vm495 = vmor %vm493, %vm494
    %v496 = vsel %vm495, %v488, %v492
    %v497 = vand.u32 2147483647, %v487
    %vm498 = vcmp.eq.f32.partialorder %v497, 8.507059e+37
    %v499 = vand.u32 %v487, 2147483648
    %v500 = vor.u32 1.1754944e-38, %v499
    %v501 = vsel %vm498, %v500, %v496
    %v502 = vmul.f32 1.0, %v501
    %v503 = vmul.f32 %v478, %v341
    %v504 = vmul.f32 %v456, %v481
    %v505 = vadd.f32 %v503, %v504
    %v506 = vtanh.pop %v505
    %v507 = vmul.f32 %v502, %v506
    %s508 = scalar_lea.vmem %s0, 8
    %v509 = vld [vmem:[%s508] sm:$0xf]
    %510 = vmatpush.msra.mxu0 %v174
    %511 = vmatpush.msra.mxu0 %v170
    %512 = vmatpush.msra.mxu0 %v166
    %513 = vmatpush.msra.mxu0 %v162
    %514 = vmatpush.msra.mxu0 %v158
    %515 = vmatpush.msra.mxu0 %v154
    %516 = vmatpush.msra.mxu0 %v150
    %517 = vmatpush.msra.mxu0 %v146
    %518 = vmatpush.msra.mxu0 %v142
    %519 = vmatpush.msra.mxu0 %v138
    %520 = vmatpush.msra.mxu0 %v134
    %521 = vmatpush.msra.mxu0 %v130
    %522 = vmatpush.msra.mxu0 %v126
    %523 = vmatpush.msra.mxu0 %v122
    %524 = vmatpush.msra.mxu0 %v118
    %525 = vmatpush.msra.mxu0 %v114
    %526 = vmatmul.f32.gmra.mxu0 %v507
    %v527 = vpop.f32.mrf.mxu0
    %v528 = vadd.f32 0.0, %v527
    %529 = vdwg.mxu0
    %530 = vmatpush.msra.mxu0 %v175
    %531 = vmatpush.msra.mxu0 %v171
    %532 = vmatpush.msra.mxu0 %v167
    %533 = vmatpush.msra.mxu0 %v163
    %534 = vmatpush.msra.mxu0 %v159
    %535 = vmatpush.msra.mxu0 %v155
    %536 = vmatpush.msra.mxu0 %v151
    %537 = vmatpush.msra.mxu0 %v147
    %538 = vmatpush.msra.mxu0 %v143
    %539 = vmatpush.msra.mxu0 %v139
    %540 = vmatpush.msra.mxu0 %v135
    %541 = vmatpush.msra.mxu0 %v131
    %542 = vmatpush.msra.mxu0 %v127
    %543 = vmatpush.msra.mxu0 %v123
    %544 = vmatpush.msra.mxu0 %v119
    %545 = vmatpush.msra.mxu0 %v115
    %546 = vmatmul.f32.gmra.mxu0 %v507
    %v547 = vpop.f32.mrf.mxu0
    %v548 = vadd.f32 0.0, %v547
    %549 = vdwg.mxu0
    %550 = vmatpush.msra.mxu0 %v176
    %551 = vmatpush.msra.mxu0 %v172
    %552 = vmatpush.msra.mxu0 %v168
    %553 = vmatpush.msra.mxu0 %v164
    %554 = vmatpush.msra.mxu0 %v160
    %555 = vmatpush.msra.mxu0 %v156
    %556 = vmatpush.msra.mxu0 %v152
    %557 = vmatpush.msra.mxu0 %v148
    %558 = vmatpush.msra.mxu0 %v144
    %559 = vmatpush.msra.mxu0 %v140
    %560 = vmatpush.msra.mxu0 %v136
    %561 = vmatpush.msra.mxu0 %v132
    %562 = vmatpush.msra.mxu0 %v128
    %563 = vmatpush.msra.mxu0 %v124
    %564 = vmatpush.msra.mxu0 %v120
    %565 = vmatpush.msra.mxu0 %v116
    %566 = vmatmul.f32.gmra.mxu0 %v507
    %v567 = vpop.f32.mrf.mxu0
    %v568 = vadd.f32 0.0, %v567
    %569 = vdwg.mxu0
    %570 = vmatpush.msra.mxu0 %v177
    %571 = vmatpush.msra.mxu0 %v173
    %572 = vmatpush.msra.mxu0 %v169
    %573 = vmatpush.msra.mxu0 %v165
    %574 = vmatpush.msra.mxu0 %v161
    %575 = vmatpush.msra.mxu0 %v157
    %576 = vmatpush.msra.mxu0 %v153
    %577 = vmatpush.msra.mxu0 %v149
    %578 = vmatpush.msra.mxu0 %v145
    %579 = vmatpush.msra.mxu0 %v141
    %580 = vmatpush.msra.mxu0 %v137
    %581 = vmatpush.msra.mxu0 %v133
    %582 = vmatpush.msra.mxu0 %v129
    %583 = vmatpush.msra.mxu0 %v125
    %584 = vmatpush.msra.mxu0 %v121
    %585 = vmatpush.msra.mxu0 %v117
    %586 = vmatmul.f32.gmra.mxu0 %v507
    %v587 = vpop.f32.mrf.mxu0
    %v588 = vadd.f32 0.0, %v587
    %589 = vdwg.mxu0
    %v594 = vrot.slane %v548, 7
    %v595 = vrot.slane %v568, 6
    %v596 = vrot.slane %v588, 5
    %v597 = vsel %vm266, %v528, %v594
    %v598 = vsel %vm268, %v595, %v596
    %v599 = vsel %vm270, %v597, %v598
    %v601 = vadd.f32 %v509, %v599
    %v602 = vsub.f32 0.0, %v601
    %v603 = vmul.f32 %v602, 1.442695
    %v604 = vpow.pop %v603
    %v605 = vadd.f32 %v604, 1.0
    %v606 = vrcp.pop %v605
    %v607 = vmul.f32 %v605, %v606
    %v608 = vsub.f32 1.0, %v607
    %v609 = vmul.f32 %v606, %v608
    %v610 = vadd.f32 %v606, %v609
    %vm611 = vweird.f32 %v605
    %vm612 = vweird.f32 %v606
    %vm613 = vmor %vm611, %vm612
    %v614 = vsel %vm613, %v606, %v610
    %v615 = vand.u32 2147483647, %v605
    %vm616 = vcmp.eq.f32.partialorder %v615, 8.507059e+37
    %v617 = vand.u32 %v605, 2147483648
    %v618 = vor.u32 1.1754944e-38, %v617
    %v619 = vsel %vm616, %v618, %v614
    %v620 = vmul.f32 1.0, %v619
    %v622 = vrot.slane %v601, 1
    %v624 = vsub.f32 0.0, %v622
    %v625 = vmul.f32 %v624, 1.442695
    %v626 = vpow.pop %v625
    %v627 = vadd.f32 %v626, 1.0
    %v628 = vrcp.pop %v627
    %v629 = vmul.f32 %v627, %v628
    %v630 = vsub.f32 1.0, %v629
    %v631 = vmul.f32 %v628, %v630
    %v632 = vadd.f32 %v628, %v631
    %vm633 = vweird.f32 %v627
    %vm634 = vweird.f32 %v628
    %vm635 = vmor %vm633, %vm634
    %v636 = vsel %vm635, %v628, %v632
    %v637 = vand.u32 2147483647, %v627
    %vm638 = vcmp.eq.f32.partialorder %v637, 8.507059e+37
    %v639 = vand.u32 %v627, 2147483648
    %v640 = vor.u32 1.1754944e-38, %v639
    %v641 = vsel %vm638, %v640, %v636
    %v642 = vmul.f32 1.0, %v641
    %v643 = vrot.slane %v601, 2
    %v645 = vtanh.pop %v643
    %v646 = vrot.slane %v601, 3
    %v648 = vsub.f32 0.0, %v646
    %v649 = vmul.f32 %v648, 1.442695
    %v650 = vpow.pop %v649
    %v651 = vadd.f32 %v650, 1.0
    %v652 = vrcp.pop %v651
    %v653 = vmul.f32 %v651, %v652
    %v654 = vsub.f32 1.0, %v653
    %v655 = vmul.f32 %v652, %v654
    %v656 = vadd.f32 %v652, %v655
    %vm657 = vweird.f32 %v651
    %vm658 = vweird.f32 %v652
    %vm659 = vmor %vm657, %vm658
    %v660 = vsel %vm659, %v652, %v656
    %v661 = vand.u32 2147483647, %v651
    %vm662 = vcmp.eq.f32.partialorder %v661, 8.507059e+37
    %v663 = vand.u32 %v651, 2147483648
    %v664 = vor.u32 1.1754944e-38, %v663
    %v665 = vsel %vm662, %v664, %v660
    %v666 = vmul.f32 1.0, %v665
    %v667 = vmul.f32 %v642, %v505
    %v668 = vmul.f32 %v620, %v645
    %v669 = vadd.f32 %v667, %v668
    %v670 = vtanh.pop %v669
    %v671 = vmul.f32 %v666, %v670
    %s672 = scalar_lea.vmem %s0, 12
    %v673 = vld [vmem:[%s672] sm:$0xf]
    %674 = vmatpush.msra.mxu0 %v174
    %675 = vmatpush.msra.mxu0 %v170
    %676 = vmatpush.msra.mxu0 %v166
    %677 = vmatpush.msra.mxu0 %v162
    %678 = vmatpush.msra.mxu0 %v158
    %679 = vmatpush.msra.mxu0 %v154
    %680 = vmatpush.msra.mxu0 %v150
    %681 = vmatpush.msra.mxu0 %v146
    %682 = vmatpush.msra.mxu0 %v142
    %683 = vmatpush.msra.mxu0 %v138
    %684 = vmatpush.msra.mxu0 %v134
    %685 = vmatpush.msra.mxu0 %v130
    %686 = vmatpush.msra.mxu0 %v126
    %687 = vmatpush.msra.mxu0 %v122
    %688 = vmatpush.msra.mxu0 %v118
    %689 = vmatpush.msra.mxu0 %v114
    %690 = vmatmul.f32.gmra.mxu0 %v671
    %v691 = vpop.f32.mrf.mxu0
    %v692 = vadd.f32 0.0, %v691
    %693 = vdwg.mxu0
    %694 = vmatpush.msra.mxu0 %v175
    %695 = vmatpush.msra.mxu0 %v171
    %696 = vmatpush.msra.mxu0 %v167
    %697 = vmatpush.msra.mxu0 %v163
    %698 = vmatpush.msra.mxu0 %v159
    %699 = vmatpush.msra.mxu0 %v155
    %700 = vmatpush.msra.mxu0 %v151
    %701 = vmatpush.msra.mxu0 %v147
    %702 = vmatpush.msra.mxu0 %v143
    %703 = vmatpush.msra.mxu0 %v139
    %704 = vmatpush.msra.mxu0 %v135
    %705 = vmatpush.msra.mxu0 %v131
    %706 = vmatpush.msra.mxu0 %v127
    %707 = vmatpush.msra.mxu0 %v123
    %708 = vmatpush.msra.mxu0 %v119
    %709 = vmatpush.msra.mxu0 %v115
    %710 = vmatmul.f32.gmra.mxu0 %v671
    %v711 = vpop.f32.mrf.mxu0
    %v712 = vadd.f32 0.0, %v711
    %713 = vdwg.mxu0
    %714 = vmatpush.msra.mxu0 %v176
    %715 = vmatpush.msra.mxu0 %v172
    %716 = vmatpush.msra.mxu0 %v168
    %717 = vmatpush.msra.mxu0 %v164
    %718 = vmatpush.msra.mxu0 %v160
    %719 = vmatpush.msra.mxu0 %v156
    %720 = vmatpush.msra.mxu0 %v152
    %721 = vmatpush.msra.mxu0 %v148
    %722 = vmatpush.msra.mxu0 %v144
    %723 = vmatpush.msra.mxu0 %v140
    %724 = vmatpush.msra.mxu0 %v136
    %725 = vmatpush.msra.mxu0 %v132
    %726 = vmatpush.msra.mxu0 %v128
    %727 = vmatpush.msra.mxu0 %v124
    %728 = vmatpush.msra.mxu0 %v120
    %729 = vmatpush.msra.mxu0 %v116
    %730 = vmatmul.f32.gmra.mxu0 %v671
    %v731 = vpop.f32.mrf.mxu0
    %v732 = vadd.f32 0.0, %v731
    %733 = vdwg.mxu0
    %734 = vmatpush.msra.mxu0 %v177
    %735 = vmatpush.msra.mxu0 %v173
    %736 = vmatpush.msra.mxu0 %v169
    %737 = vmatpush.msra.mxu0 %v165
    %738 = vmatpush.msra.mxu0 %v161
    %739 = vmatpush.msra.mxu0 %v157
    %740 = vmatpush.msra.mxu0 %v153
    %741 = vmatpush.msra.mxu0 %v149
    %742 = vmatpush.msra.mxu0 %v145
    %743 = vmatpush.msra.mxu0 %v141
    %744 = vmatpush.msra.mxu0 %v137
    %745 = vmatpush.msra.mxu0 %v133
    %746 = vmatpush.msra.mxu0 %v129
    %747 = vmatpush.msra.mxu0 %v125
    %748 = vmatpush.msra.mxu0 %v121
    %749 = vmatpush.msra.mxu0 %v117
    %750 = vmatmul.f32.gmra.mxu0 %v671
    %v751 = vpop.f32.mrf.mxu0
    %v752 = vadd.f32 0.0, %v751
    %753 = vdwg.mxu0
    %v758 = vrot.slane %v712, 7
    %v759 = vrot.slane %v732, 6
    %v760 = vrot.slane %v752, 5
    %v761 = vsel %vm266, %v692, %v758
    %v762 = vsel %vm268, %v759, %v760
    %v763 = vsel %vm270, %v761, %v762
    %v765 = vadd.f32 %v673, %v763
    %v766 = vsub.f32 0.0, %v765
    %v767 = vmul.f32 %v766, 1.442695
    %v768 = vpow.pop %v767
    %v769 = vadd.f32 %v768, 1.0
    %v770 = vrcp.pop %v769
    %v771 = vmul.f32 %v769, %v770
    %v772 = vsub.f32 1.0, %v771
    %v773 = vmul.f32 %v770, %v772
    %v774 = vadd.f32 %v770, %v773
    %vm775 = vweird.f32 %v769
    %vm776 = vweird.f32 %v770
    %vm777 = vmor %vm775, %vm776
    %v778 = vsel %vm777, %v770, %v774
    %v779 = vand.u32 2147483647, %v769
    %vm780 = vcmp.eq.f32.partialorder %v779, 8.507059e+37
    %v781 = vand.u32 %v769, 2147483648
    %v782 = vor.u32 1.1754944e-38, %v781
    %v783 = vsel %vm780, %v782, %v778
    %v784 = vmul.f32 1.0, %v783
    %v786 = vrot.slane %v765, 1
    %v788 = vsub.f32 0.0, %v786
    %v789 = vmul.f32 %v788, 1.442695
    %v790 = vpow.pop %v789
    %v791 = vadd.f32 %v790, 1.0
    %v792 = vrcp.pop %v791
    %v793 = vmul.f32 %v791, %v792
    %v794 = vsub.f32 1.0, %v793
    %v795 = vmul.f32 %v792, %v794
    %v796 = vadd.f32 %v792, %v795
    %vm797 = vweird.f32 %v791
    %vm798 = vweird.f32 %v792
    %vm799 = vmor %vm797, %vm798
    %v800 = vsel %vm799, %v792, %v796
    %v801 = vand.u32 2147483647, %v791
    %vm802 = vcmp.eq.f32.partialorder %v801, 8.507059e+37
    %v803 = vand.u32 %v791, 2147483648
    %v804 = vor.u32 1.1754944e-38, %v803
    %v805 = vsel %vm802, %v804, %v800
    %v806 = vmul.f32 1.0, %v805
    %v807 = vrot.slane %v765, 2
    %v809 = vtanh.pop %v807
    %v810 = vrot.slane %v765, 3
    %v812 = vsub.f32 0.0, %v810
    %v813 = vmul.f32 %v812, 1.442695
    %v814 = vpow.pop %v813
    %v815 = vadd.f32 %v814, 1.0
    %v816 = vrcp.pop %v815
    %v817 = vmul.f32 %v815, %v816
    %v818 = vsub.f32 1.0, %v817
    %v819 = vmul.f32 %v816, %v818
    %v820 = vadd.f32 %v816, %v819
    %vm821 = vweird.f32 %v815
    %vm822 = vweird.f32 %v816
    %vm823 = vmor %vm821, %vm822
    %v824 = vsel %vm823, %v816, %v820
    %v825 = vand.u32 2147483647, %v815
    %vm826 = vcmp.eq.f32.partialorder %v825, 8.507059e+37
    %v827 = vand.u32 %v815, 2147483648
    %v828 = vor.u32 1.1754944e-38, %v827
    %v829 = vsel %vm826, %v828, %v824
    %v830 = vmul.f32 1.0, %v829
    %v831 = vmul.f32 %v806, %v669
    %v832 = vmul.f32 %v784, %v809
    %v833 = vadd.f32 %v831, %v832
    %v834 = vtanh.pop %v833
    %v835 = vmul.f32 %v830, %v834
    %s836 = scalar_lea.vmem %s0, 16
    %v837 = vld [vmem:[%s836] sm:$0xf]
    %838 = vmatpush.msra.mxu0 %v174
    %839 = vmatpush.msra.mxu0 %v170
    %840 = vmatpush.msra.mxu0 %v166
    %841 = vmatpush.msra.mxu0 %v162
    %842 = vmatpush.msra.mxu0 %v158
    %843 = vmatpush.msra.mxu0 %v154
    %844 = vmatpush.msra.mxu0 %v150
    %845 = vmatpush.msra.mxu0 %v146
    %846 = vmatpush.msra.mxu0 %v142
    %847 = vmatpush.msra.mxu0 %v138
    %848 = vmatpush.msra.mxu0 %v134
    %849 = vmatpush.msra.mxu0 %v130
    %850 = vmatpush.msra.mxu0 %v126
    %851 = vmatpush.msra.mxu0 %v122
    %852 = vmatpush.msra.mxu0 %v118
    %853 = vmatpush.msra.mxu0 %v114
    %854 = vmatmul.f32.gmra.mxu0 %v835
    %v855 = vpop.f32.mrf.mxu0
    %v856 = vadd.f32 0.0, %v855
    %857 = vdwg.mxu0
    %858 = vmatpush.msra.mxu0 %v175
    %859 = vmatpush.msra.mxu0 %v171
    %860 = vmatpush.msra.mxu0 %v167
    %861 = vmatpush.msra.mxu0 %v163
    %862 = vmatpush.msra.mxu0 %v159
    %863 = vmatpush.msra.mxu0 %v155
    %864 = vmatpush.msra.mxu0 %v151
    %865 = vmatpush.msra.mxu0 %v147
    %866 = vmatpush.msra.mxu0 %v143
    %867 = vmatpush.msra.mxu0 %v139
    %868 = vmatpush.msra.mxu0 %v135
    %869 = vmatpush.msra.mxu0 %v131
    %870 = vmatpush.msra.mxu0 %v127
    %871 = vmatpush.msra.mxu0 %v123
    %872 = vmatpush.msra.mxu0 %v119
    %873 = vmatpush.msra.mxu0 %v115
    %874 = vmatmul.f32.gmra.mxu0 %v835
    %v875 = vpop.f32.mrf.mxu0
    %v876 = vadd.f32 0.0, %v875
    %877 = vdwg.mxu0
    %878 = vmatpush.msra.mxu0 %v176
    %879 = vmatpush.msra.mxu0 %v172
    %880 = vmatpush.msra.mxu0 %v168
    %881 = vmatpush.msra.mxu0 %v164
    %882 = vmatpush.msra.mxu0 %v160
    %883 = vmatpush.msra.mxu0 %v156
    %884 = vmatpush.msra.mxu0 %v152
    %885 = vmatpush.msra.mxu0 %v148
    %886 = vmatpush.msra.mxu0 %v144
    %887 = vmatpush.msra.mxu0 %v140
    %888 = vmatpush.msra.mxu0 %v136
    %889 = vmatpush.msra.mxu0 %v132
    %890 = vmatpush.msra.mxu0 %v128
    %891 = vmatpush.msra.mxu0 %v124
    %892 = vmatpush.msra.mxu0 %v120
    %893 = vmatpush.msra.mxu0 %v116
    %894 = vmatmul.f32.gmra.mxu0 %v835
    %v895 = vpop.f32.mrf.mxu0
    %v896 = vadd.f32 0.0, %v895
    %897 = vdwg.mxu0
    %898 = vmatpush.msra.mxu0 %v177
    %899 = vmatpush.msra.mxu0 %v173
    %900 = vmatpush.msra.mxu0 %v169
    %901 = vmatpush.msra.mxu0 %v165
    %902 = vmatpush.msra.mxu0 %v161
    %903 = vmatpush.msra.mxu0 %v157
    %904 = vmatpush.msra.mxu0 %v153
    %905 = vmatpush.msra.mxu0 %v149
    %906 = vmatpush.msra.mxu0 %v145
    %907 = vmatpush.msra.mxu0 %v141
    %908 = vmatpush.msra.mxu0 %v137
    %909 = vmatpush.msra.mxu0 %v133
    %910 = vmatpush.msra.mxu0 %v129
    %911 = vmatpush.msra.mxu0 %v125
    %912 = vmatpush.msra.mxu0 %v121
    %913 = vmatpush.msra.mxu0 %v117
    %914 = vmatmul.f32.gmra.mxu0 %v835
    %v915 = vpop.f32.mrf.mxu0
    %v916 = vadd.f32 0.0, %v915
    %917 = vdwg.mxu0
    %v922 = vrot.slane %v876, 7
    %v923 = vrot.slane %v896, 6
    %v924 = vrot.slane %v916, 5
    %v925 = vsel %vm266, %v856, %v922
    %v926 = vsel %vm268, %v923, %v924
    %v927 = vsel %vm270, %v925, %v926
    %v929 = vadd.f32 %v837, %v927
    %v930 = vsub.f32 0.0, %v929
    %v931 = vmul.f32 %v930, 1.442695
    %v932 = vpow.pop %v931
    %v933 = vadd.f32 %v932, 1.0
    %v934 = vrcp.pop %v933
    %v935 = vmul.f32 %v933, %v934
    %v936 = vsub.f32 1.0, %v935
    %v937 = vmul.f32 %v934, %v936
    %v938 = vadd.f32 %v934, %v937
    %vm939 = vweird.f32 %v933
    %vm940 = vweird.f32 %v934
    %vm941 = vmor %vm939, %vm940
    %v942 = vsel %vm941, %v934, %v938
    %v943 = vand.u32 2147483647, %v933
    %vm944 = vcmp.eq.f32.partialorder %v943, 8.507059e+37
    %v945 = vand.u32 %v933, 2147483648
    %v946 = vor.u32 1.1754944e-38, %v945
    %v947 = vsel %vm944, %v946, %v942
    %v948 = vmul.f32 1.0, %v947
    %v950 = vrot.slane %v929, 1
    %v952 = vsub.f32 0.0, %v950
    %v953 = vmul.f32 %v952, 1.442695
    %v954 = vpow.pop %v953
    %v955 = vadd.f32 %v954, 1.0
    %v956 = vrcp.pop %v955
    %v957 = vmul.f32 %v955, %v956
    %v958 = vsub.f32 1.0, %v957
    %v959 = vmul.f32 %v956, %v958
    %v960 = vadd.f32 %v956, %v959
    %vm961 = vweird.f32 %v955
    %vm962 = vweird.f32 %v956
    %vm963 = vmor %vm961, %vm962
    %v964 = vsel %vm963, %v956, %v960
    %v965 = vand.u32 2147483647, %v955
    %vm966 = vcmp.eq.f32.partialorder %v965, 8.507059e+37
    %v967 = vand.u32 %v955, 2147483648
    %v968 = vor.u32 1.1754944e-38, %v967
    %v969 = vsel %vm966, %v968, %v964
    %v970 = vmul.f32 1.0, %v969
    %v971 = vrot.slane %v929, 2
    %v973 = vtanh.pop %v971
    %v974 = vrot.slane %v929, 3
    %v976 = vsub.f32 0.0, %v974
    %v977 = vmul.f32 %v976, 1.442695
    %v978 = vpow.pop %v977
    %v979 = vadd.f32 %v978, 1.0
    %v980 = vrcp.pop %v979
    %v981 = vmul.f32 %v979, %v980
    %v982 = vsub.f32 1.0, %v981
    %v983 = vmul.f32 %v980, %v982
    %v984 = vadd.f32 %v980, %v983
    %vm985 = vweird.f32 %v979
    %vm986 = vweird.f32 %v980
    %vm987 = vmor %vm985, %vm986
    %v988 = vsel %vm987, %v980, %v984
    %v989 = vand.u32 2147483647, %v979
    %vm990 = vcmp.eq.f32.partialorder %v989, 8.507059e+37
    %v991 = vand.u32 %v979, 2147483648
    %v992 = vor.u32 1.1754944e-38, %v991
    %v993 = vsel %vm990, %v992, %v988
    %v994 = vmul.f32 1.0, %v993
    %v995 = vmul.f32 %v970, %v833
    %v996 = vmul.f32 %v948, %v973
    %v997 = vadd.f32 %v995, %v996
    %v998 = vtanh.pop %v997
    %v999 = vmul.f32 %v994, %v998
    %s1000 = scalar_lea.vmem %s0, 20
    %v1001 = vld [vmem:[%s1000] sm:$0xf]
    %1002 = vmatpush.msra.mxu0 %v174
    %1003 = vmatpush.msra.mxu0 %v170
    %1004 = vmatpush.msra.mxu0 %v166
    %1005 = vmatpush.msra.mxu0 %v162
    %1006 = vmatpush.msra.mxu0 %v158
    %1007 = vmatpush.msra.mxu0 %v154
    %1008 = vmatpush.msra.mxu0 %v150
    %1009 = vmatpush.msra.mxu0 %v146
    %1010 = vmatpush.msra.mxu0 %v142
    %1011 = vmatpush.msra.mxu0 %v138
    %1012 = vmatpush.msra.mxu0 %v134
    %1013 = vmatpush.msra.mxu0 %v130
    %1014 = vmatpush.msra.mxu0 %v126
    %1015 = vmatpush.msra.mxu0 %v122
    %1016 = vmatpush.msra.mxu0 %v118
    %1017 = vmatpush.msra.mxu0 %v114
    %1018 = vmatmul.f32.gmra.mxu0 %v999
    %v1019 = vpop.f32.mrf.mxu0
    %v1020 = vadd.f32 0.0, %v1019
    %1021 = vdwg.mxu0
    %1022 = vmatpush.msra.mxu0 %v175
    %1023 = vmatpush.msra.mxu0 %v171
    %1024 = vmatpush.msra.mxu0 %v167
    %1025 = vmatpush.msra.mxu0 %v163
    %1026 = vmatpush.msra.mxu0 %v159
    %1027 = vmatpush.msra.mxu0 %v155
    %1028 = vmatpush.msra.mxu0 %v151
    %1029 = vmatpush.msra.mxu0 %v147
    %1030 = vmatpush.msra.mxu0 %v143
    %1031 = vmatpush.msra.mxu0 %v139
    %1032 = vmatpush.msra.mxu0 %v135
    %1033 = vmatpush.msra.mxu0 %v131
    %1034 = vmatpush.msra.mxu0 %v127
    %1035 = vmatpush.msra.mxu0 %v123
    %1036 = vmatpush.msra.mxu0 %v119
    %1037 = vmatpush.msra.mxu0 %v115
    %1038 = vmatmul.f32.gmra.mxu0 %v999
    %v1039 = vpop.f32.mrf.mxu0
    %v1040 = vadd.f32 0.0, %v1039
    %1041 = vdwg.mxu0
    %1042 = vmatpush.msra.mxu0 %v176
    %1043 = vmatpush.msra.mxu0 %v172
    %1044 = vmatpush.msra.mxu0 %v168
    %1045 = vmatpush.msra.mxu0 %v164
    %1046 = vmatpush.msra.mxu0 %v160
    %1047 = vmatpush.msra.mxu0 %v156
    %1048 = vmatpush.msra.mxu0 %v152
    %1049 = vmatpush.msra.mxu0 %v148
    %1050 = vmatpush.msra.mxu0 %v144
    %1051 = vmatpush.msra.mxu0 %v140
    %1052 = vmatpush.msra.mxu0 %v136
    %1053 = vmatpush.msra.mxu0 %v132
    %1054 = vmatpush.msra.mxu0 %v128
    %1055 = vmatpush.msra.mxu0 %v124
    %1056 = vmatpush.msra.mxu0 %v120
    %1057 = vmatpush.msra.mxu0 %v116
    %1058 = vmatmul.f32.gmra.mxu0 %v999
    %v1059 = vpop.f32.mrf.mxu0
    %v1060 = vadd.f32 0.0, %v1059
    %1061 = vdwg.mxu0
    %1062 = vmatpush.msra.mxu0 %v177
    %1063 = vmatpush.msra.mxu0 %v173
    %1064 = vmatpush.msra.mxu0 %v169
    %1065 = vmatpush.msra.mxu0 %v165
    %1066 = vmatpush.msra.mxu0 %v161
    %1067 = vmatpush.msra.mxu0 %v157
    %1068 = vmatpush.msra.mxu0 %v153
    %1069 = vmatpush.msra.mxu0 %v149
    %1070 = vmatpush.msra.mxu0 %v145
    %1071 = vmatpush.msra.mxu0 %v141
    %1072 = vmatpush.msra.mxu0 %v137
    %1073 = vmatpush.msra.mxu0 %v133
    %1074 = vmatpush.msra.mxu0 %v129
    %1075 = vmatpush.msra.mxu0 %v125
    %1076 = vmatpush.msra.mxu0 %v121
    %1077 = vmatpush.msra.mxu0 %v117
    %1078 = vmatmul.f32.gmra.mxu0 %v999
    %v1079 = vpop.f32.mrf.mxu0
    %v1080 = vadd.f32 0.0, %v1079
    %1081 = vdwg.mxu0
    %v1086 = vrot.slane %v1040, 7
    %v1087 = vrot.slane %v1060, 6
    %v1088 = vrot.slane %v1080, 5
    %v1089 = vsel %vm266, %v1020, %v1086
    %v1090 = vsel %vm268, %v1087, %v1088
    %v1091 = vsel %vm270, %v1089, %v1090
    %v1093 = vadd.f32 %v1001, %v1091
    %v1094 = vsub.f32 0.0, %v1093
    %v1095 = vmul.f32 %v1094, 1.442695
    %v1096 = vpow.pop %v1095
    %v1097 = vadd.f32 %v1096, 1.0
    %v1098 = vrcp.pop %v1097
    %v1099 = vmul.f32 %v1097, %v1098
    %v1100 = vsub.f32 1.0, %v1099
    %v1101 = vmul.f32 %v1098, %v1100
    %v1102 = vadd.f32 %v1098, %v1101
    %vm1103 = vweird.f32 %v1097
    %vm1104 = vweird.f32 %v1098
    %vm1105 = vmor %vm1103, %vm1104
    %v1106 = vsel %vm1105, %v1098, %v1102
    %v1107 = vand.u32 2147483647, %v1097
    %vm1108 = vcmp.eq.f32.partialorder %v1107, 8.507059e+37
    %v1109 = vand.u32 %v1097, 2147483648
    %v1110 = vor.u32 1.1754944e-38, %v1109
    %v1111 = vsel %vm1108, %v1110, %v1106
    %v1112 = vmul.f32 1.0, %v1111
    %v1114 = vrot.slane %v1093, 1
    %v1116 = vsub.f32 0.0, %v1114
    %v1117 = vmul.f32 %v1116, 1.442695
    %v1118 = vpow.pop %v1117
    %v1119 = vadd.f32 %v1118, 1.0
    %v1120 = vrcp.pop %v1119
    %v1121 = vmul.f32 %v1119, %v1120
    %v1122 = vsub.f32 1.0, %v1121
    %v1123 = vmul.f32 %v1120, %v1122
    %v1124 = vadd.f32 %v1120, %v1123
    %vm1125 = vweird.f32 %v1119
    %vm1126 = vweird.f32 %v1120
    %vm1127 = vmor %vm1125, %vm1126
    %v1128 = vsel %vm1127, %v1120, %v1124
    %v1129 = vand.u32 2147483647, %v1119
    %vm1130 = vcmp.eq.f32.partialorder %v1129, 8.507059e+37
    %v1131 = vand.u32 %v1119, 2147483648
    %v1132 = vor.u32 1.1754944e-38, %v1131
    %v1133 = vsel %vm1130, %v1132, %v1128
    %v1134 = vmul.f32 1.0, %v1133
    %v1135 = vrot.slane %v1093, 2
    %v1137 = vtanh.pop %v1135
    %v1138 = vrot.slane %v1093, 3
    %v1140 = vsub.f32 0.0, %v1138
    %v1141 = vmul.f32 %v1140, 1.442695
    %v1142 = vpow.pop %v1141
    %v1143 = vadd.f32 %v1142, 1.0
    %v1144 = vrcp.pop %v1143
    %v1145 = vmul.f32 %v1143, %v1144
    %v1146 = vsub.f32 1.0, %v1145
    %v1147 = vmul.f32 %v1144, %v1146
    %v1148 = vadd.f32 %v1144, %v1147
    %vm1149 = vweird.f32 %v1143
    %vm1150 = vweird.f32 %v1144
    %vm1151 = vmor %vm1149, %vm1150
    %v1152 = vsel %vm1151, %v1144, %v1148
    %v1153 = vand.u32 2147483647, %v1143
    %vm1154 = vcmp.eq.f32.partialorder %v1153, 8.507059e+37
    %v1155 = vand.u32 %v1143, 2147483648
    %v1156 = vor.u32 1.1754944e-38, %v1155
    %v1157 = vsel %vm1154, %v1156, %v1152
    %v1158 = vmul.f32 1.0, %v1157
    %v1159 = vmul.f32 %v1134, %v997
    %v1160 = vmul.f32 %v1112, %v1137
    %v1161 = vadd.f32 %v1159, %v1160
    %v1162 = vtanh.pop %v1161
    %v1163 = vmul.f32 %v1158, %v1162
    %s1164 = scalar_lea.vmem %s0, 24
    %v1165 = vld [vmem:[%s1164] sm:$0xf]
    %1166 = vmatpush.msra.mxu0 %v174
    %1167 = vmatpush.msra.mxu0 %v170
    %1168 = vmatpush.msra.mxu0 %v166
    %1169 = vmatpush.msra.mxu0 %v162
    %1170 = vmatpush.msra.mxu0 %v158
    %1171 = vmatpush.msra.mxu0 %v154
    %1172 = vmatpush.msra.mxu0 %v150
    %1173 = vmatpush.msra.mxu0 %v146
    %1174 = vmatpush.msra.mxu0 %v142
    %1175 = vmatpush.msra.mxu0 %v138
    %1176 = vmatpush.msra.mxu0 %v134
    %1177 = vmatpush.msra.mxu0 %v130
    %1178 = vmatpush.msra.mxu0 %v126
    %1179 = vmatpush.msra.mxu0 %v122
    %1180 = vmatpush.msra.mxu0 %v118
    %1181 = vmatpush.msra.mxu0 %v114
    %1182 = vmatmul.f32.gmra.mxu0 %v1163
    %v1183 = vpop.f32.mrf.mxu0
    %v1184 = vadd.f32 0.0, %v1183
    %1185 = vdwg.mxu0
    %1186 = vmatpush.msra.mxu0 %v175
    %1187 = vmatpush.msra.mxu0 %v171
    %1188 = vmatpush.msra.mxu0 %v167
    %1189 = vmatpush.msra.mxu0 %v163
    %1190 = vmatpush.msra.mxu0 %v159
    %1191 = vmatpush.msra.mxu0 %v155
    %1192 = vmatpush.msra.mxu0 %v151
    %1193 = vmatpush.msra.mxu0 %v147
    %1194 = vmatpush.msra.mxu0 %v143
    %1195 = vmatpush.msra.mxu0 %v139
    %1196 = vmatpush.msra.mxu0 %v135
    %1197 = vmatpush.msra.mxu0 %v131
    %1198 = vmatpush.msra.mxu0 %v127
    %1199 = vmatpush.msra.mxu0 %v123
    %1200 = vmatpush.msra.mxu0 %v119
    %1201 = vmatpush.msra.mxu0 %v115
    %1202 = vmatmul.f32.gmra.mxu0 %v1163
    %v1203 = vpop.f32.mrf.mxu0
    %v1204 = vadd.f32 0.0, %v1203
    %1205 = vdwg.mxu0
    %1206 = vmatpush.msra.mxu0 %v176
    %1207 = vmatpush.msra.mxu0 %v172
    %1208 = vmatpush.msra.mxu0 %v168
    %1209 = vmatpush.msra.mxu0 %v164
    %1210 = vmatpush.msra.mxu0 %v160
    %1211 = vmatpush.msra.mxu0 %v156
    %1212 = vmatpush.msra.mxu0 %v152
    %1213 = vmatpush.msra.mxu0 %v148
    %1214 = vmatpush.msra.mxu0 %v144
    %1215 = vmatpush.msra.mxu0 %v140
    %1216 = vmatpush.msra.mxu0 %v136
    %1217 = vmatpush.msra.mxu0 %v132
    %1218 = vmatpush.msra.mxu0 %v128
    %1219 = vmatpush.msra.mxu0 %v124
    %1220 = vmatpush.msra.mxu0 %v120
    %1221 = vmatpush.msra.mxu0 %v116
    %1222 = vmatmul.f32.gmra.mxu0 %v1163
    %v1223 = vpop.f32.mrf.mxu0
    %v1224 = vadd.f32 0.0, %v1223
    %1225 = vdwg.mxu0
    %1226 = vmatpush.msra.mxu0 %v177
    %1227 = vmatpush.msra.mxu0 %v173
    %1228 = vmatpush.msra.mxu0 %v169
    %1229 = vmatpush.msra.mxu0 %v165
    %1230 = vmatpush.msra.mxu0 %v161
    %1231 = vmatpush.msra.mxu0 %v157
    %1232 = vmatpush.msra.mxu0 %v153
    %1233 = vmatpush.msra.mxu0 %v149
    %1234 = vmatpush.msra.mxu0 %v145
    %1235 = vmatpush.msra.mxu0 %v141
    %1236 = vmatpush.msra.mxu0 %v137
    %1237 = vmatpush.msra.mxu0 %v133
    %1238 = vmatpush.msra.mxu0 %v129
    %1239 = vmatpush.msra.mxu0 %v125
    %1240 = vmatpush.msra.mxu0 %v121
    %1241 = vmatpush.msra.mxu0 %v117
    %1242 = vmatmul.f32.gmra.mxu0 %v1163
    %v1243 = vpop.f32.mrf.mxu0
    %v1244 = vadd.f32 0.0, %v1243
    %1245 = vdwg.mxu0
    %v1250 = vrot.slane %v1204, 7
    %v1251 = vrot.slane %v1224, 6
    %v1252 = vrot.slane %v1244, 5
    %v1253 = vsel %vm266, %v1184, %v1250
    %v1254 = vsel %vm268, %v1251, %v1252
    %v1255 = vsel %vm270, %v1253, %v1254
    %v1257 = vadd.f32 %v1165, %v1255
    %v1258 = vsub.f32 0.0, %v1257
    %v1259 = vmul.f32 %v1258, 1.442695
    %v1260 = vpow.pop %v1259
    %v1261 = vadd.f32 %v1260, 1.0
    %v1262 = vrcp.pop %v1261
    %v1263 = vmul.f32 %v1261, %v1262
    %v1264 = vsub.f32 1.0, %v1263
    %v1265 = vmul.f32 %v1262, %v1264
    %v1266 = vadd.f32 %v1262, %v1265
    %vm1267 = vweird.f32 %v1261
    %vm1268 = vweird.f32 %v1262
    %vm1269 = vmor %vm1267, %vm1268
    %v1270 = vsel %vm1269, %v1262, %v1266
    %v1271 = vand.u32 2147483647, %v1261
    %vm1272 = vcmp.eq.f32.partialorder %v1271, 8.507059e+37
    %v1273 = vand.u32 %v1261, 2147483648
    %v1274 = vor.u32 1.1754944e-38, %v1273
    %v1275 = vsel %vm1272, %v1274, %v1270
    %v1276 = vmul.f32 1.0, %v1275
    %v1278 = vrot.slane %v1257, 1
    %v1280 = vsub.f32 0.0, %v1278
    %v1281 = vmul.f32 %v1280, 1.442695
    %v1282 = vpow.pop %v1281
    %v1283 = vadd.f32 %v1282, 1.0
    %v1284 = vrcp.pop %v1283
    %v1285 = vmul.f32 %v1283, %v1284
    %v1286 = vsub.f32 1.0, %v1285
    %v1287 = vmul.f32 %v1284, %v1286
    %v1288 = vadd.f32 %v1284, %v1287
    %vm1289 = vweird.f32 %v1283
    %vm1290 = vweird.f32 %v1284
    %vm1291 = vmor %vm1289, %vm1290
    %v1292 = vsel %vm1291, %v1284, %v1288
    %v1293 = vand.u32 2147483647, %v1283
    %vm1294 = vcmp.eq.f32.partialorder %v1293, 8.507059e+37
    %v1295 = vand.u32 %v1283, 2147483648
    %v1296 = vor.u32 1.1754944e-38, %v1295
    %v1297 = vsel %vm1294, %v1296, %v1292
    %v1298 = vmul.f32 1.0, %v1297
    %v1299 = vrot.slane %v1257, 2
    %v1301 = vtanh.pop %v1299
    %v1302 = vrot.slane %v1257, 3
    %v1304 = vsub.f32 0.0, %v1302
    %v1305 = vmul.f32 %v1304, 1.442695
    %v1306 = vpow.pop %v1305
    %v1307 = vadd.f32 %v1306, 1.0
    %v1308 = vrcp.pop %v1307
    %v1309 = vmul.f32 %v1307, %v1308
    %v1310 = vsub.f32 1.0, %v1309
    %v1311 = vmul.f32 %v1308, %v1310
    %v1312 = vadd.f32 %v1308, %v1311
    %vm1313 = vweird.f32 %v1307
    %vm1314 = vweird.f32 %v1308
    %vm1315 = vmor %vm1313, %vm1314
    %v1316 = vsel %vm1315, %v1308, %v1312
    %v1317 = vand.u32 2147483647, %v1307
    %vm1318 = vcmp.eq.f32.partialorder %v1317, 8.507059e+37
    %v1319 = vand.u32 %v1307, 2147483648
    %v1320 = vor.u32 1.1754944e-38, %v1319
    %v1321 = vsel %vm1318, %v1320, %v1316
    %v1322 = vmul.f32 1.0, %v1321
    %v1323 = vmul.f32 %v1298, %v1161
    %v1324 = vmul.f32 %v1276, %v1301
    %v1325 = vadd.f32 %v1323, %v1324
    %v1326 = vtanh.pop %v1325
    %v1327 = vmul.f32 %v1322, %v1326
    %s1328 = scalar_lea.vmem %s0, 28
    %v1329 = vld [vmem:[%s1328] sm:$0xf]
    %1330 = vmatpush.msra.mxu0 %v174
    %1331 = vmatpush.msra.mxu0 %v170
    %1332 = vmatpush.msra.mxu0 %v166
    %1333 = vmatpush.msra.mxu0 %v162
    %1334 = vmatpush.msra.mxu0 %v158
    %1335 = vmatpush.msra.mxu0 %v154
    %1336 = vmatpush.msra.mxu0 %v150
    %1337 = vmatpush.msra.mxu0 %v146
    %1338 = vmatpush.msra.mxu0 %v142
    %1339 = vmatpush.msra.mxu0 %v138
    %1340 = vmatpush.msra.mxu0 %v134
    %1341 = vmatpush.msra.mxu0 %v130
    %1342 = vmatpush.msra.mxu0 %v126
    %1343 = vmatpush.msra.mxu0 %v122
    %1344 = vmatpush.msra.mxu0 %v118
    %1345 = vmatpush.msra.mxu0 %v114
    %1346 = vmatmul.f32.gmra.mxu0 %v1327
    %v1347 = vpop.f32.mrf.mxu0
    %v1348 = vadd.f32 0.0, %v1347
    %1349 = vdwg.mxu0
    %1350 = vmatpush.msra.mxu0 %v175
    %1351 = vmatpush.msra.mxu0 %v171
    %1352 = vmatpush.msra.mxu0 %v167
    %1353 = vmatpush.msra.mxu0 %v163
    %1354 = vmatpush.msra.mxu0 %v159
    %1355 = vmatpush.msra.mxu0 %v155
    %1356 = vmatpush.msra.mxu0 %v151
    %1357 = vmatpush.msra.mxu0 %v147
    %1358 = vmatpush.msra.mxu0 %v143
    %1359 = vmatpush.msra.mxu0 %v139
    %1360 = vmatpush.msra.mxu0 %v135
    %1361 = vmatpush.msra.mxu0 %v131
    %1362 = vmatpush.msra.mxu0 %v127
    %1363 = vmatpush.msra.mxu0 %v123
    %1364 = vmatpush.msra.mxu0 %v119
    %1365 = vmatpush.msra.mxu0 %v115
    %1366 = vmatmul.f32.gmra.mxu0 %v1327
    %v1367 = vpop.f32.mrf.mxu0
    %v1368 = vadd.f32 0.0, %v1367
    %1369 = vdwg.mxu0
    %1370 = vmatpush.msra.mxu0 %v176
    %1371 = vmatpush.msra.mxu0 %v172
    %1372 = vmatpush.msra.mxu0 %v168
    %1373 = vmatpush.msra.mxu0 %v164
    %1374 = vmatpush.msra.mxu0 %v160
    %1375 = vmatpush.msra.mxu0 %v156
    %1376 = vmatpush.msra.mxu0 %v152
    %1377 = vmatpush.msra.mxu0 %v148
    %1378 = vmatpush.msra.mxu0 %v144
    %1379 = vmatpush.msra.mxu0 %v140
    %1380 = vmatpush.msra.mxu0 %v136
    %1381 = vmatpush.msra.mxu0 %v132
    %1382 = vmatpush.msra.mxu0 %v128
    %1383 = vmatpush.msra.mxu0 %v124
    %1384 = vmatpush.msra.mxu0 %v120
    %1385 = vmatpush.msra.mxu0 %v116
    %1386 = vmatmul.f32.gmra.mxu0 %v1327
    %v1387 = vpop.f32.mrf.mxu0
    %v1388 = vadd.f32 0.0, %v1387
    %1389 = vdwg.mxu0
    %1390 = vmatpush.msra.mxu0 %v177
    %1391 = vmatpush.msra.mxu0 %v173
    %1392 = vmatpush.msra.mxu0 %v169
    %1393 = vmatpush.msra.mxu0 %v165
    %1394 = vmatpush.msra.mxu0 %v161
    %1395 = vmatpush.msra.mxu0 %v157
    %1396 = vmatpush.msra.mxu0 %v153
    %1397 = vmatpush.msra.mxu0 %v149
    %1398 = vmatpush.msra.mxu0 %v145
    %1399 = vmatpush.msra.mxu0 %v141
    %1400 = vmatpush.msra.mxu0 %v137
    %1401 = vmatpush.msra.mxu0 %v133
    %1402 = vmatpush.msra.mxu0 %v129
    %1403 = vmatpush.msra.mxu0 %v125
    %1404 = vmatpush.msra.mxu0 %v121
    %1405 = vmatpush.msra.mxu0 %v117
    %1406 = vmatmul.f32.gmra.mxu0 %v1327
    %v1407 = vpop.f32.mrf.mxu0
    %v1408 = vadd.f32 0.0, %v1407
    %1409 = vdwg.mxu0
    %v1414 = vrot.slane %v1368, 7
    %v1415 = vrot.slane %v1388, 6
    %v1416 = vrot.slane %v1408, 5
    %v1417 = vsel %vm266, %v1348, %v1414
    %v1418 = vsel %vm268, %v1415, %v1416
    %v1419 = vsel %vm270, %v1417, %v1418
    %v1421 = vadd.f32 %v1329, %v1419
    %v1422 = vsub.f32 0.0, %v1421
    %v1423 = vmul.f32 %v1422, 1.442695
    %v1424 = vpow.pop %v1423
    %v1425 = vadd.f32 %v1424, 1.0
    %v1426 = vrcp.pop %v1425
    %v1427 = vmul.f32 %v1425, %v1426
    %v1428 = vsub.f32 1.0, %v1427
    %v1429 = vmul.f32 %v1426, %v1428
    %v1430 = vadd.f32 %v1426, %v1429
    %vm1431 = vweird.f32 %v1425
    %vm1432 = vweird.f32 %v1426
    %vm1433 = vmor %vm1431, %vm1432
    %v1434 = vsel %vm1433, %v1426, %v1430
    %v1435 = vand.u32 2147483647, %v1425
    %vm1436 = vcmp.eq.f32.partialorder %v1435, 8.507059e+37
    %v1437 = vand.u32 %v1425, 2147483648
    %v1438 = vor.u32 1.1754944e-38, %v1437
    %v1439 = vsel %vm1436, %v1438, %v1434
    %v1440 = vmul.f32 1.0, %v1439
    %v1442 = vrot.slane %v1421, 1
    %v1444 = vsub.f32 0.0, %v1442
    %v1445 = vmul.f32 %v1444, 1.442695
    %v1446 = vpow.pop %v1445
    %v1447 = vadd.f32 %v1446, 1.0
    %v1448 = vrcp.pop %v1447
    %v1449 = vmul.f32 %v1447, %v1448
    %v1450 = vsub.f32 1.0, %v1449
    %v1451 = vmul.f32 %v1448, %v1450
    %v1452 = vadd.f32 %v1448, %v1451
    %vm1453 = vweird.f32 %v1447
    %vm1454 = vweird.f32 %v1448
    %vm1455 = vmor %vm1453, %vm1454
    %v1456 = vsel %vm1455, %v1448, %v1452
    %v1457 = vand.u32 2147483647, %v1447
    %vm1458 = vcmp.eq.f32.partialorder %v1457, 8.507059e+37
    %v1459 = vand.u32 %v1447, 2147483648
    %v1460 = vor.u32 1.1754944e-38, %v1459
    %v1461 = vsel %vm1458, %v1460, %v1456
    %v1462 = vmul.f32 1.0, %v1461
    %v1463 = vrot.slane %v1421, 2
    %v1465 = vtanh.pop %v1463
    %v1466 = vrot.slane %v1421, 3
    %v1468 = vsub.f32 0.0, %v1466
    %v1469 = vmul.f32 %v1468, 1.442695
    %v1470 = vpow.pop %v1469
    %v1471 = vadd.f32 %v1470, 1.0
    %v1472 = vrcp.pop %v1471
    %v1473 = vmul.f32 %v1471, %v1472
    %v1474 = vsub.f32 1.0, %v1473
    %v1475 = vmul.f32 %v1472, %v1474
    %v1476 = vadd.f32 %v1472, %v1475
    %vm1477 = vweird.f32 %v1471
    %vm1478 = vweird.f32 %v1472
    %vm1479 = vmor %vm1477, %vm1478
    %v1480 = vsel %vm1479, %v1472, %v1476
    %v1481 = vand.u32 2147483647, %v1471
    %vm1482 = vcmp.eq.f32.partialorder %v1481, 8.507059e+37
    %v1483 = vand.u32 %v1471, 2147483648
    %v1484 = vor.u32 1.1754944e-38, %v1483
    %v1485 = vsel %vm1482, %v1484, %v1480
    %v1486 = vmul.f32 1.0, %v1485
    %v1487 = vmul.f32 %v1462, %v1325
    %v1488 = vmul.f32 %v1440, %v1465
    %v1489 = vadd.f32 %v1487, %v1488
    %v1490 = vtanh.pop %v1489
    %v1491 = vmul.f32 %v1486, %v1490
    %v1492 = vld [vmem:[#allocation2] sm:$0xf]
    %v1493 = vld [vmem:[#allocation2 + $0x4] sm:$0xf]
    %v1494 = vld [vmem:[#allocation2 + $0x8] sm:$0xf]
    %v1495 = vld [vmem:[#allocation2 + $0xc] sm:$0xf]
    %v1496 = vld [vmem:[#allocation2 + $0x10] sm:$0xf]
    %v1497 = vld [vmem:[#allocation2 + $0x14] sm:$0xf]
    %v1498 = vld [vmem:[#allocation2 + $0x18] sm:$0xf]
    %v1499 = vld [vmem:[#allocation2 + $0x1c] sm:$0xf]
    %v1500 = vld [vmem:[#allocation2 + $0x20] sm:$0xf]
    %v1501 = vld [vmem:[#allocation2 + $0x24] sm:$0xf]
    %v1502 = vld [vmem:[#allocation2 + $0x28] sm:$0xf]
    %v1503 = vld [vmem:[#allocation2 + $0x2c] sm:$0xf]
    %v1504 = vld [vmem:[#allocation2 + $0x30] sm:$0xf]
    %v1505 = vld [vmem:[#allocation2 + $0x34] sm:$0xf]
    %v1506 = vld [vmem:[#allocation2 + $0x38] sm:$0xf]
    %v1507 = vld [vmem:[#allocation2 + $0x3c] sm:$0xf]
    %v1508 = vunpack.c.l.bf16 %v1492
    %v1509 = vunpack.c.l.bf16 %v1493
    %v1510 = vunpack.c.l.bf16 %v1494
    %v1511 = vunpack.c.l.bf16 %v1495
    %v1512 = vunpack.c.l.bf16 %v1496
    %v1513 = vunpack.c.l.bf16 %v1497
    %v1514 = vunpack.c.l.bf16 %v1498
    %v1515 = vunpack.c.l.bf16 %v1499
    %v1516 = vunpack.c.l.bf16 %v1500
    %v1517 = vunpack.c.l.bf16 %v1501
    %v1518 = vunpack.c.l.bf16 %v1502
    %v1519 = vunpack.c.l.bf16 %v1503
    %v1520 = vunpack.c.l.bf16 %v1504
    %v1521 = vunpack.c.l.bf16 %v1505
    %v1522 = vunpack.c.l.bf16 %v1506
    %v1523 = vunpack.c.l.bf16 %v1507
    %v1524 = vld [vmem:[%s2] sm:$0x1]
    %v1525 = vld [vmem:[#allocation4] sm:$0xf]
    %v1526 = vld [vmem:[#allocation4 + $0x4] sm:$0xf]
    %v1527 = vld [vmem:[#allocation4 + $0x8] sm:$0xf]
    %v1528 = vld [vmem:[#allocation4 + $0xc] sm:$0xf]
    %v1529 = vld [vmem:[#allocation4 + $0x10] sm:$0xf]
    %v1530 = vld [vmem:[#allocation4 + $0x14] sm:$0xf]
    %v1531 = vld [vmem:[#allocation4 + $0x18] sm:$0xf]
    %v1532 = vld [vmem:[#allocation4 + $0x1c] sm:$0xf]
    %v1533 = vld [vmem:[#allocation4 + $0x20] sm:$0xf]
    %v1534 = vld [vmem:[#allocation4 + $0x24] sm:$0xf]
    %v1535 = vld [vmem:[#allocation4 + $0x28] sm:$0xf]
    %v1536 = vld [vmem:[#allocation4 + $0x2c] sm:$0xf]
    %v1537 = vld [vmem:[#allocation4 + $0x30] sm:$0xf]
    %v1538 = vld [vmem:[#allocation4 + $0x34] sm:$0xf]
    %v1539 = vld [vmem:[#allocation4 + $0x38] sm:$0xf]
    %v1540 = vld [vmem:[#allocation4 + $0x3c] sm:$0xf]
    %v1541 = vunpack.c.l.bf16 %v1525
    %v1542 = vunpack.c.l.bf16 %v1526
    %v1543 = vunpack.c.l.bf16 %v1527
    %v1544 = vunpack.c.l.bf16 %v1528
    %v1545 = vunpack.c.l.bf16 %v1529
    %v1546 = vunpack.c.l.bf16 %v1530
    %v1547 = vunpack.c.l.bf16 %v1531
    %v1548 = vunpack.c.l.bf16 %v1532
    %v1549 = vunpack.c.l.bf16 %v1533
    %v1550 = vunpack.c.l.bf16 %v1534
    %v1551 = vunpack.c.l.bf16 %v1535
    %v1552 = vunpack.c.l.bf16 %v1536
    %v1553 = vunpack.c.l.bf16 %v1537
    %v1554 = vunpack.c.l.bf16 %v1538
    %v1555 = vunpack.c.l.bf16 %v1539
    %v1556 = vunpack.c.l.bf16 %v1540
    %1557 = vmatpush.msra.mxu0 %v1556
    %1558 = vmatpush.msra.mxu0 %v1555
    %1559 = vmatpush.msra.mxu0 %v1554
    %1560 = vmatpush.msra.mxu0 %v1553
    %1561 = vmatpush.msra.mxu0 %v1552
    %1562 = vmatpush.msra.mxu0 %v1551
    %1563 = vmatpush.msra.mxu0 %v1550
    %1564 = vmatpush.msra.mxu0 %v1549
    %1565 = vmatpush.msra.mxu0 %v1548
    %1566 = vmatpush.msra.mxu0 %v1547
    %1567 = vmatpush.msra.mxu0 %v1546
    %1568 = vmatpush.msra.mxu0 %v1545
    %1569 = vmatpush.msra.mxu0 %v1544
    %1570 = vmatpush.msra.mxu0 %v1543
    %1571 = vmatpush.msra.mxu0 %v1542
    %1572 = vmatpush.msra.mxu0 %v1541
    %1573 = vmatmul.f32.gmra.mxu0 %v1524
    %v1574 = vpop.f32.mrf.mxu0
    %v1575 = vadd.f32 0.0, %v1574
    %1576 = vdwg.mxu0
    %1577 = vmatpush.msra.mxu0 %v1523
    %1578 = vmatpush.msra.mxu0 %v1522
    %1579 = vmatpush.msra.mxu0 %v1521
    %1580 = vmatpush.msra.mxu0 %v1520
    %1581 = vmatpush.msra.mxu0 %v1519
    %1582 = vmatpush.msra.mxu0 %v1518
    %1583 = vmatpush.msra.mxu0 %v1517
    %1584 = vmatpush.msra.mxu0 %v1516
    %1585 = vmatpush.msra.mxu0 %v1515
    %1586 = vmatpush.msra.mxu0 %v1514
    %1587 = vmatpush.msra.mxu0 %v1513
    %1588 = vmatpush.msra.mxu0 %v1512
    %1589 = vmatpush.msra.mxu0 %v1511
    %1590 = vmatpush.msra.mxu0 %v1510
    %1591 = vmatpush.msra.mxu0 %v1509
    %1592 = vmatpush.msra.mxu0 %v1508
    %1593 = vmatmul.f32.gmra.mxu0 %v1491
    %v1594 = vpop.f32.mrf.mxu0
    %v1595 = vadd.f32 %v1575, %v1594
    %1596 = vdwg.mxu0
    %v1597 = vld [vmem:[%s5] sm:$0x1]
    %v1598 = vadd.f32 %v1595, %v1597
    %v1599 = vmax.f32 %v1598, 0.0
    %v1600 = vld [vmem:[#allocation6] sm:$0xf]
    %v1601 = vld [vmem:[#allocation6 + $0x4] sm:$0xf]
    %v1602 = vld [vmem:[#allocation6 + $0x8] sm:$0xf]
    %v1603 = vld [vmem:[#allocation6 + $0xc] sm:$0xf]
    %v1604 = vld [vmem:[#allocation6 + $0x10] sm:$0xf]
    %v1605 = vld [vmem:[#allocation6 + $0x14] sm:$0xf]
    %v1606 = vld [vmem:[#allocation6 + $0x18] sm:$0xf]
    %v1607 = vld [vmem:[#allocation6 + $0x1c] sm:$0xf]
    %v1608 = vld [vmem:[#allocation6 + $0x20] sm:$0xf]
    %v1609 = vld [vmem:[#allocation6 + $0x24] sm:$0xf]
    %v1610 = vld [vmem:[#allocation6 + $0x28] sm:$0xf]
    %v1611 = vld [vmem:[#allocation6 + $0x2c] sm:$0xf]
    %v1612 = vld [vmem:[#allocation6 + $0x30] sm:$0xf]
    %v1613 = vld [vmem:[#allocation6 + $0x34] sm:$0xf]
    %v1614 = vld [vmem:[#allocation6 + $0x38] sm:$0xf]
    %v1615 = vld [vmem:[#allocation6 + $0x3c] sm:$0xf]
    %v1616 = vunpack.c.l.bf16 %v1600
    %v1617 = vunpack.c.l.bf16 %v1601
    %v1618 = vunpack.c.l.bf16 %v1602
    %v1619 = vunpack.c.l.bf16 %v1603
    %v1620 = vunpack.c.l.bf16 %v1604
    %v1621 = vunpack.c.l.bf16 %v1605
    %v1622 = vunpack.c.l.bf16 %v1606
    %v1623 = vunpack.c.l.bf16 %v1607
    %v1624 = vunpack.c.l.bf16 %v1608
    %v1625 = vunpack.c.l.bf16 %v1609
    %v1626 = vunpack.c.l.bf16 %v1610
    %v1627 = vunpack.c.l.bf16 %v1611
    %v1628 = vunpack.c.l.bf16 %v1612
    %v1629 = vunpack.c.l.bf16 %v1613
    %v1630 = vunpack.c.l.bf16 %v1614
    %v1631 = vunpack.c.l.bf16 %v1615
    %v1632 = vld [vmem:[%s7] sm:$0x1]
    %1633 = vmatpush.msra.mxu0 %v1631
    %1634 = vmatpush.msra.mxu0 %v1630
    %1635 = vmatpush.msra.mxu0 %v1629
    %1636 = vmatpush.msra.mxu0 %v1628
    %1637 = vmatpush.msra.mxu0 %v1627
    %1638 = vmatpush.msra.mxu0 %v1626
    %1639 = vmatpush.msra.mxu0 %v1625
    %1640 = vmatpush.msra.mxu0 %v1624
    %1641 = vmatpush.msra.mxu0 %v1623
    %1642 = vmatpush.msra.mxu0 %v1622
    %1643 = vmatpush.msra.mxu0 %v1621
    %1644 = vmatpush.msra.mxu0 %v1620
    %1645 = vmatpush.msra.mxu0 %v1619
    %1646 = vmatpush.msra.mxu0 %v1618
    %1647 = vmatpush.msra.mxu0 %v1617
    %1648 = vmatpush.msra.mxu0 %v1616
    %1649 = vmatmul.f32.gmra.mxu0 %v1599
    %v1650 = vpop.f32.mrf.mxu0
    %v1651 = vadd.f32 %v1632, %v1650
    %1652 = vdwg.mxu0
    %v1653 = vmax.f32 %v1651, 0.0
    %v1654 = vld [vmem:[%s8] sm:$0xff]
    %v1655 = vld [vmem:[%s8 + $0x8] sm:$0xf]
    %v1656 = vld [vmem:[%s8 + $0xc] sm:$0xff]
    %v1657 = vld [vmem:[%s8 + $0x14] sm:$0xf]
    %v1658 = vld [vmem:[%s8 + $0x18] sm:$0xff]
    %v1659 = vld [vmem:[%s8 + $0x20] sm:$0xf]
    %v1660 = vld [vmem:[%s8 + $0x24] sm:$0xff]
    %v1661 = vld [vmem:[%s8 + $0x2c] sm:$0xf]
    %v1662 = vld [vmem:[%s8 + $0x30] sm:$0xff]
    %v1663 = vld [vmem:[%s8 + $0x38] sm:$0xf]
    %v1664 = vld [vmem:[%s8 + $0x3c] sm:$0xff]
    %v1665 = vld [vmem:[%s8 + $0x44] sm:$0xf]
    %v1666 = vld [vmem:[%s8 + $0x48] sm:$0xff]
    %v1667 = vld [vmem:[%s8 + $0x50] sm:$0xf]
    %v1668 = vld [vmem:[%s8 + $0x54] sm:$0xff]
    %v1669 = vld [vmem:[%s8 + $0x5c] sm:$0xf]
    %v1670 = vld [vmem:[%s8 + $0x60] sm:$0xff]
    %v1671 = vld [vmem:[%s8 + $0x68] sm:$0xf]
    %v1672 = vld [vmem:[%s8 + $0x6c] sm:$0xff]
    %v1673 = vld [vmem:[%s8 + $0x74] sm:$0xf]
    %v1674 = vld [vmem:[%s8 + $0x78] sm:$0xff]
    %v1675 = vld [vmem:[%s8 + $0x80] sm:$0xf]
    %v1676 = vld [vmem:[%s8 + $0x84] sm:$0xff]
    %v1677 = vld [vmem:[%s8 + $0x8c] sm:$0xf]
    %v1678 = vld [vmem:[%s8 + $0x90] sm:$0xff]
    %v1679 = vld [vmem:[%s8 + $0x98] sm:$0xf]
    %v1680 = vld [vmem:[%s8 + $0x9c] sm:$0xff]
    %v1681 = vld [vmem:[%s8 + $0xa4] sm:$0xf]
    %v1682 = vld [vmem:[%s8 + $0xa8] sm:$0xff]
    %v1683 = vld [vmem:[%s8 + $0xb0] sm:$0xf]
    %v1684 = vld [vmem:[%s8 + $0xb4] sm:$0xff]
    %v1685 = vld [vmem:[%s8 + $0xbc] sm:$0xf]
    %v1686 = vunpack.c.l.bf16 %v1654
    %v1687 = vunpack.c.h.bf16 %v1654
    %v1688 = vunpack.c.l.bf16 %v1655
    %v1689 = vunpack.c.l.bf16 %v1656
    %v1690 = vunpack.c.h.bf16 %v1656
    %v1691 = vunpack.c.l.bf16 %v1657
    %v1692 = vunpack.c.l.bf16 %v1658
    %v1693 = vunpack.c.h.bf16 %v1658
    %v1694 = vunpack.c.l.bf16 %v1659
    %v1695 = vunpack.c.l.bf16 %v1660
    %v1696 = vunpack.c.h.bf16 %v1660
    %v1697 = vunpack.c.l.bf16 %v1661
    %v1698 = vunpack.c.l.bf16 %v1662
    %v1699 = vunpack.c.h.bf16 %v1662
    %v1700 = vunpack.c.l.bf16 %v1663
    %v1701 = vunpack.c.l.bf16 %v1664
    %v1702 = vunpack.c.h.bf16 %v1664
    %v1703 = vunpack.c.l.bf16 %v1665
    %v1704 = vunpack.c.l.bf16 %v1666
    %v1705 = vunpack.c.h.bf16 %v1666
    %v1706 = vunpack.c.l.bf16 %v1667
    %v1707 = vunpack.c.l.bf16 %v1668
    %v1708 = vunpack.c.h.bf16 %v1668
    %v1709 = vunpack.c.l.bf16 %v1669
    %v1710 = vunpack.c.l.bf16 %v1670
    %v1711 = vunpack.c.h.bf16 %v1670
    %v1712 = vunpack.c.l.bf16 %v1671
    %v1713 = vunpack.c.l.bf16 %v1672
    %v1714 = vunpack.c.h.bf16 %v1672
    %v1715 = vunpack.c.l.bf16 %v1673
    %v1716 = vunpack.c.l.bf16 %v1674
    %v1717 = vunpack.c.h.bf16 %v1674
    %v1718 = vunpack.c.l.bf16 %v1675
    %v1719 = vunpack.c.l.bf16 %v1676
    %v1720 = vunpack.c.h.bf16 %v1676
    %v1721 = vunpack.c.l.bf16 %v1677
    %v1722 = vunpack.c.l.bf16 %v1678
    %v1723 = vunpack.c.h.bf16 %v1678
    %v1724 = vunpack.c.l.bf16 %v1679
    %v1725 = vunpack.c.l.bf16 %v1680
    %v1726 = vunpack.c.h.bf16 %v1680
    %v1727 = vunpack.c.l.bf16 %v1681
    %v1728 = vunpack.c.l.bf16 %v1682
    %v1729 = vunpack.c.h.bf16 %v1682
    %v1730 = vunpack.c.l.bf16 %v1683
    %v1731 = vunpack.c.l.bf16 %v1684
    %v1732 = vunpack.c.h.bf16 %v1684
    %v1733 = vunpack.c.l.bf16 %v1685
    %v1734 = vld [vmem:[%s9] sm:$0x7]
    %v1736 = vperm.slane %v1734, 0
    %v1737 = vperm.slane %v1734, 1
    %v1738 = vperm.slane %v1734, 2
    %1742 = vmatpush.msra.mxu0 %v1731
    %1743 = vmatpush.msra.mxu0 %v1728
    %1744 = vmatpush.msra.mxu0 %v1725
    %1745 = vmatpush.msra.mxu0 %v1722
    %1746 = vmatpush.msra.mxu0 %v1719
    %1747 = vmatpush.msra.mxu0 %v1716
    %1748 = vmatpush.msra.mxu0 %v1713
    %1749 = vmatpush.msra.mxu0 %v1710
    %1750 = vmatpush.msra.mxu0 %v1707
    %1751 = vmatpush.msra.mxu0 %v1704
    %1752 = vmatpush.msra.mxu0 %v1701
    %1753 = vmatpush.msra.mxu0 %v1698
    %1754 = vmatpush.msra.mxu0 %v1695
    %1755 = vmatpush.msra.mxu0 %v1692
    %1756 = vmatpush.msra.mxu0 %v1689
    %1757 = vmatpush.msra.mxu0 %v1686
    %1758 = vmatmul.f32.gmra.mxu0 %v1653
    %v1759 = vpop.f32.mrf.mxu0
    %v1760 = vadd.f32 %v1736, %v1759
    %1761 = vdwg.mxu0
    %1762 = vmatpush.msra.mxu0 %v1732
    %1763 = vmatpush.msra.mxu0 %v1729
    %1764 = vmatpush.msra.mxu0 %v1726
    %1765 = vmatpush.msra.mxu0 %v1723
    %1766 = vmatpush.msra.mxu0 %v1720
    %1767 = vmatpush.msra.mxu0 %v1717
    %1768 = vmatpush.msra.mxu0 %v1714
    %1769 = vmatpush.msra.mxu0 %v1711
    %1770 = vmatpush.msra.mxu0 %v1708
    %1771 = vmatpush.msra.mxu0 %v1705
    %1772 = vmatpush.msra.mxu0 %v1702
    %1773 = vmatpush.msra.mxu0 %v1699
    %1774 = vmatpush.msra.mxu0 %v1696
    %1775 = vmatpush.msra.mxu0 %v1693
    %1776 = vmatpush.msra.mxu0 %v1690
    %1777 = vmatpush.msra.mxu0 %v1687
    %1778 = vmatmul.f32.gmra.mxu0 %v1653
    %v1779 = vpop.f32.mrf.mxu0
    %v1780 = vadd.f32 %v1737, %v1779
    %1781 = vdwg.mxu0
    %1782 = vmatpush.msra.mxu0 %v1733
    %1783 = vmatpush.msra.mxu0 %v1730
    %1784 = vmatpush.msra.mxu0 %v1727
    %1785 = vmatpush.msra.mxu0 %v1724
    %1786 = vmatpush.msra.mxu0 %v1721
    %1787 = vmatpush.msra.mxu0 %v1718
    %1788 = vmatpush.msra.mxu0 %v1715
    %1789 = vmatpush.msra.mxu0 %v1712
    %1790 = vmatpush.msra.mxu0 %v1709
    %1791 = vmatpush.msra.mxu0 %v1706
    %1792 = vmatpush.msra.mxu0 %v1703
    %1793 = vmatpush.msra.mxu0 %v1700
    %1794 = vmatpush.msra.mxu0 %v1697
    %1795 = vmatpush.msra.mxu0 %v1694
    %1796 = vmatpush.msra.mxu0 %v1691
    %1797 = vmatpush.msra.mxu0 %v1688
    %1798 = vmatmul.f32.gmra.mxu0 %v1653
    %v1799 = vpop.f32.mrf.mxu0
    %v1800 = vadd.f32 %v1738, %v1799
    %1801 = vdwg.mxu0
    %v1805 = vrot.slane %v1780, 7
    %v1806 = vrot.slane %v1800, 6
    %v1807 = vsel %vm266, %v1760, %v1805
    %v1808 = vsel %vm270, %v1807, %v1806
    %v1810 = vlaneseq
    %vm1811 = vcmp.ge.s32.totalorder %v1810, 0
    %vm1812 = vcmp.lt.s32.totalorder %v1810, 384
    %vm1813 = vmand %vm1811, %vm1812
    %1814 = vst.msk [vmem:[%s10] sm:$0x7] %vm1813, %v1808
    // Predicated region
    $region54: #{mlp_projector_forward.1} parent=1 // pred_check
      _
    $region55: #{mlp_projector_forward.1} parent=1 // pred_check_branch
      %1816 = sbr.rel (0) target = $region57
    $region56: #{mlp_projector_forward.1} parent=1 // pred_region
      _
    $region57: #{mlp_projector_forward.1} parent=1 // pred_fallthru
      _
    // Predicated region
    $region58: #{mlp_projector_forward.1} parent=1 // pred_check
      _
    $region59: #{mlp_projector_forward.1} parent=1 // pred_check_branch
      %1818 = sbr.rel (0) target = $region61
    $region60: #{mlp_projector_forward.1} parent=1 // pred_region
      _
    $region61: #{mlp_projector_forward.1} parent=1 // pred_fallthru
      _
    %1819 = vsyncpa [#allocation3], 1
    %1820 = vsyncpa [#allocation5], 1

</llo_original>
